<compile_context>
chip_gen: v5e
topology: v5e:2x2
jax: 0.10.0
libtpu: 0.0.40
codegen_flags: <defaults>
</compile_context>

<pallas_src>
import functools

import jax
import jax.numpy as jnp
from jax import lax
from jax.experimental import pallas as pl
from jax.experimental.pallas import tpu as pltpu

# Fixed (non-trainable) Sobel taps, exactly as in Sobelxy.__init__ (reference only).
KX = ((-1.0, 0.0, 1.0), (-2.0, 0.0, 2.0), (-1.0, 0.0, 1.0))
KY = ((1.0, 2.0, 1.0), (0.0, 0.0, 0.0), (-1.0, -2.0, -1.0))


def _sobel_loss_kernel(vi_ref, ir_ref, fu_ref, out_ref,
                       acc_ref, hs_vi, hd_vi, hs_ir, hd_ir, hs_fu, hd_fu,
                       *, W, TH, H, H_pad, scale):
    """One (slot, row-tile) grid step.

    Grid = (2 slots, H_pad // TH row tiles).  Tile t covers input rows
    [t*TH, t*TH+TH-1] and accumulates the loss contribution of output rows
    [t*TH-1, t*TH+TH-2] (separable Sobel; 2-row hs/hd carry provides the top halo).
    The final output row H-1 is added at the last step from the carry.
    """
    t = pl.program_id(1)

    @pl.when(t == 0)
    def _init():
        acc_ref[...] = jnp.zeros_like(acc_ref)
        for c in (hs_vi, hd_vi, hs_ir, hd_ir, hs_fu, hd_fu):
            c[...] = jnp.zeros_like(c)          # zero top halo (conv zero padding)

    # Column-border masks: kill the wrapped lane produced by the lane rolls
    # (emulates the conv's zero padding along the column direction).
    col = lax.broadcasted_iota(jnp.int32, (1, W), 1)
    has_left = col > 0                          # column j-1 exists
    has_right = col < W - 1                     # column j+1 exists

    def grads(x_ref, hs_c, hd_c):
        """Return (|sobel| for rows k=0..TH-1 with rows 0,1 invalid, boundary (2, W))."""
        x = x_ref[0].astype(jnp.float32)                              # (TH, W)
        xl = jnp.where(has_left, pltpu.roll(x, 1, axis=1), 0.0)       # x[:, j-1]
        xr = jnp.where(has_right, pltpu.roll(x, W - 1, axis=1), 0.0)  # x[:, j+1]
        hs = xl + 2.0 * x + xr                                        # column smooth (gy)
        hd = xr - xl                                                  # column diff   (gx)

        # Interior output rows k >= 2 (global t*TH-1+k):
        #   gx[k] = hd[k-2] + 2 hd[k-1] + hd[k],   gy[k] = hs[k-2] - hs[k].
        # Sublane rolls run on the XLU; their wrapped rows 0,1 are masked out later.
        hd_1 = pltpu.roll(hd, 1, axis=0)
        hd_2 = pltpu.roll(hd, 2, axis=0)
        hs_2 = pltpu.roll(hs, 2, axis=0)
        g = jnp.abs(hd_2 + 2.0 * hd_1 + hd) + jnp.abs(hs_2 - hs)      # (TH, W)

        # Boundary output rows k = 0, 1 use the carried rows t*TH-2, t*TH-1.
        hs_p = hs_c[...]                                              # (2, W)
        hd_p = hd_c[...]
        hs01 = hs[0:2, :]
        hd01 = hd[0:2, :]
        hd_m1 = jnp.concatenate([hd_p[1:2, :], hd01[0:1, :]], axis=0)  # hd at k-1
        g_b = jnp.abs(hd_p + 2.0 * hd_m1 + hd01) + jnp.abs(hs_p - hs01)  # (2, W)

        # Carry this tile's last two hs/hd rows for the next tile / finalize.
        hs_c[...] = hs[TH - 2:TH, :]
        hd_c[...] = hd[TH - 2:TH, :]
        return g, g_b

    g_vi, gb_vi = grads(vi_ref, hs_vi, hd_vi)
    g_ir, gb_ir = grads(ir_ref, hs_ir, hd_ir)
    g_fu, gb_fu = grads(fu_ref, hs_fu, hd_fu)

    # Interior contribution: rows 0,1 contain roll wrap-around -> masked out.
    diff = jnp.abs(jnp.maximum(g_vi, g_ir) - g_fu)                    # (TH, W)
    row = lax.broadcasted_iota(jnp.int32, (TH, 1), 0)
    valid = row >= 2
    if H_pad != H:  # only traced when rows were zero-padded host-side
        valid = jnp.logical_and(valid, row + (t * TH - 1) < H)
    diff = jnp.where(valid, diff, 0.0)
    acc_ref[...] += diff.reshape(TH // 8, 8, W).sum(axis=0)           # VALU-only fold

    # Boundary contribution (output rows t*TH-1 and t*TH); global row -1 at t == 0
    # is the conv's top padding row and is excluded.
    diff_b = jnp.abs(jnp.maximum(gb_vi, gb_ir) - gb_fu)               # (2, W)
    row_b = lax.broadcasted_iota(jnp.int32, (2, 1), 0)
    diff_b = jnp.where(jnp.logical_or(row_b >= 1, t > 0), diff_b, 0.0)
    acc_ref[0:2, :] = acc_ref[0:2, :] + diff_b

    @pl.when(t == pl.num_programs(1) - 1)
    def _finish():
        if H == H_pad:
            # Output row H-1: bottom halo is zero padding; rows H-2, H-1 are exactly
            # what the carry holds after this step's update.
            def last_row(hs_c, hd_c):
                gx = hd_c[0:1, :] + 2.0 * hd_c[1:2, :]
                gy = hs_c[0:1, :]
                return jnp.abs(gx) + jnp.abs(gy)                      # (1, W)

            d_last = jnp.abs(jnp.maximum(last_row(hs_vi, hd_vi),
                                         last_row(hs_ir, hd_ir))
                             - last_row(hs_fu, hd_fu))
            extra = jnp.sum(d_last)
        else:
            extra = jnp.float32(0.0)   # padded: rows >= H are excluded entirely
        total = jnp.sum(acc_ref[...]) + extra                         # one cross-lane reduce
        out_ref[...] = jnp.broadcast_to(total * scale, (1, 1, 1)).astype(jnp.float32)


def _choose_tile_rows(H, W, itemsize, tile_rows=None):
    """Pick the row-tile height TH and the padded height H_pad (= k*TH).

    Targets ~1 MiB per (TH, W) input block (big enough to amortize the per-grid-step
    overhead, small enough that 3 inputs x 2 pipeline buffers + temporaries stay far
    below every generation's VMEM, including v7x's 64 MiB).  Prefers an exact divisor
    of H (no padding); otherwise rows are zero-padded host-side and masked in-kernel.
    """
    sub = max(8, 32 // max(int(itemsize), 1))     # sublane packing: f32 8, bf16 16, int8 32
    if tile_rows is not None:
        th = max(sub, (int(tile_rows) // sub) * sub)
    else:
        cap = (1 << 20) // max(W * int(itemsize), 1)
        cap = max(sub, min(512, (cap // sub) * sub))
        if H <= cap:
            th = ((H + sub - 1) // sub) * sub      # single tile (padded only if needed)
        else:
            th = 0
            if H % sub == 0:                       # largest divisor tile <= cap: no pad
                for cand in range(cap, sub - 1, -sub):
                    if H % cand == 0:
                        th = cand
                        break
            if th < max(sub, cap // 2):            # no decent divisor -> pad instead
                th = cap
    h_pad = ((H + th - 1) // th) * th
    return th, h_pad


def sobel_loss2(img_vi, img_ir, img_fu, reduction="mean", loss_weight=1.0,
                tile_rows=None):
    """JAX/Pallas equivalent of SobelLoss2.forward (reduction='mean')."""
    assert reduction == "mean"
    N, C, H, W = img_vi.shape
    # SobelLoss2.forward tuple-unpacks the Sobelxy output along dim 0 into
    # (grad_x, grad_y), so N must be 2, and Sobelxy is a 1->1 channel conv.
    assert N == 2 and C == 1, "SobelLoss2 semantics require inputs of shape (2, 1, H, W)"
    assert img_ir.shape == img_vi.shape and img_fu.shape == img_vi.shape
    assert img_ir.dtype == img_vi.dtype and img_fu.dtype == img_vi.dtype

    itemsize = jnp.dtype(img_vi.dtype).itemsize
    TH, H_pad = _choose_tile_rows(H, W, itemsize, tile_rows)
    num_tiles = H_pad // TH

    def prep(x):
        # Keep the native storage dtype (upcast happens in-kernel) so narrow producers
        # (bf16/f16) keep HBM traffic halved; pad rows only if TH does not divide H.
        x = x.reshape(2, H, W)
        if H_pad != H:
            x = jnp.pad(x, ((0, 0), (0, H_pad - H), (0, 0)))
        return x

    vi, ir, fu = prep(img_vi), prep(img_ir), prep(img_fu)

    kernel = functools.partial(
        _sobel_loss_kernel, W=W, TH=TH, H=H, H_pad=H_pad,
        scale=float(loss_weight) / float(H * W))

    out = pl.pallas_call(
        kernel,
        out_shape=jax.ShapeDtypeStruct((2, 1, 1), jnp.float32),   # per-slot partial loss
        grid_spec=pltpu.PrefetchScalarGridSpec(
            num_scalar_prefetch=0,
            grid=(2, num_tiles),                                  # (slot, row tile)
            in_specs=[pl.BlockSpec((1, TH, W), lambda s, t: (s, t, 0))
                      for _ in range(3)],
            out_specs=pl.BlockSpec((1, 1, 1), lambda s, t: (s, 0, 0)),
            scratch_shapes=[pltpu.VMEM((8, W), jnp.float32)]           # loss partials
            + [pltpu.VMEM((2, W), jnp.float32) for _ in range(6)],     # hs/hd carries
        ),
        compiler_params=pltpu.CompilerParams(
            # Slots are independent -> "parallel" (2nd TensorCore on v7x); the row axis
            # carries halo + accumulator state -> "arbitrary".
            dimension_semantics=("parallel", "arbitrary"),
            vmem_limit_bytes=32 * 1024 * 1024),
    )(vi, ir, fu)
    return jnp.sum(out)


def _reference_loss(img_vi, img_ir, img_fu, loss_weight=1.0):
    """Pure-JAX reference using lax.conv (NCHW, cross-correlation like F.conv2d)."""
    kx = jnp.asarray(KX, jnp.float32)[None, None]   # (1,1,3,3)
    ky = jnp.asarray(KY, jnp.float32)[None, None]

    def grad(x):
        x = x.astype(jnp.float32)
        sx = lax.conv_general_dilated(x, kx, (1, 1), ((1, 1), (1, 1)),
                                      dimension_numbers=("NCHW", "OIHW", "NCHW"))
        sy = lax.conv_general_dilated(x, ky, (1, 1), ((1, 1), (1, 1)),
                                      dimension_numbers=("NCHW", "OIHW", "NCHW"))
        return jnp.abs(sx) + jnp.abs(sy)

    g_vi, g_ir, g_fu = grad(img_vi), grad(img_ir), grad(img_fu)
    joint_x = jnp.maximum(g_vi[0], g_ir[0])
    joint_y = jnp.maximum(g_vi[1], g_ir[1])
    loss = jnp.mean(jnp.abs(joint_x - g_fu[0])) + jnp.mean(jnp.abs(joint_y - g_fu[1]))
    return loss * loss_weight


if __name__ == "__main__":
    key = jax.random.PRNGKey(0)
    # (H, W, weight, tile_rows override, dtype):
    #   1) single tile, default tiling;             2) multi-tile (exercises row carry);
    #   3) H not divisible (host pad + row mask);   4) bf16 inputs (native-dtype DMA).
    cases = [
        (64, 128, 1.0, None, jnp.float32),
        (256, 128, 1.0, 64, jnp.float32),
        (200, 256, 0.5, 64, jnp.float32),
        (64, 128, 1.0, None, jnp.bfloat16),
    ]
    for (H, W, lw, tr, dt) in cases:
        key, k1, k2, k3 = jax.random.split(key, 4)
        shape = (2, 1, H, W)   # (N=2 [x/y slots], C=1, H, W)
        img_vi = jax.random.uniform(k1, shape, dtype=jnp.float32).astype(dt)
        img_ir = jax.random.uniform(k2, shape, dtype=jnp.float32).astype(dt)
        img_fu = jax.random.uniform(k3, shape, dtype=jnp.float32).astype(dt)

        loss = jax.block_until_ready(
            sobel_loss2(img_vi, img_ir, img_fu, loss_weight=lw, tile_rows=tr))
        ref = jax.block_until_ready(
            _reference_loss(img_vi, img_ir, img_fu, loss_weight=lw))
        assert jnp.allclose(loss, ref, rtol=1e-4, atol=1e-5), \
            (H, W, str(dt), float(loss), float(ref))

    print("KERNEL_OK")
</pallas_src>

<mosaic_0001>
module attributes {stable_mosaic.version = 11 : i64} {
  func.func @_sobel_loss_kernel(%arg0: i32, %arg1: i32, %arg2: memref<1x64x128xf32, #tpu.memory_space<vmem>>, %arg3: memref<1x64x128xf32, #tpu.memory_space<vmem>>, %arg4: memref<1x64x128xf32, #tpu.memory_space<vmem>>, %arg5: memref<1x1x1xf32, #tpu.memory_space<vmem>>, %arg6: memref<8x128xf32, #tpu.memory_space<vmem>>, %arg7: memref<2x128xf32, #tpu.memory_space<vmem>>, %arg8: memref<2x128xf32, #tpu.memory_space<vmem>>, %arg9: memref<2x128xf32, #tpu.memory_space<vmem>>, %arg10: memref<2x128xf32, #tpu.memory_space<vmem>>, %arg11: memref<2x128xf32, #tpu.memory_space<vmem>>, %arg12: memref<2x128xf32, #tpu.memory_space<vmem>>) attributes {dimension_semantics = [#tpu.dimension_semantics<parallel>, #tpu.dimension_semantics<arbitrary>], iteration_bounds = array<i64: 2, 1>, scalar_prefetch = 0 : i64, scratch_operands = 7 : i64, tpu.core_type = #tpu.core_type<tc>, window_params = [{transform_indices = @transform_0, window_bounds = array<i64: 1, 64, 128>}, {transform_indices = @transform_1, window_bounds = array<i64: 1, 64, 128>}, {transform_indices = @transform_2, window_bounds = array<i64: 1, 64, 128>}, {transform_indices = @transform_3, window_bounds = array<i64: 1, 1, 1>}]} {
    %c0_i32 = arith.constant 0 : i32
    %0 = arith.cmpi eq, %arg1, %c0_i32 : i32
    %1 = arith.extui %0 : i1 to i32
    %c0_i32_0 = arith.constant 0 : i32
    %2 = arith.cmpi ne, %1, %c0_i32_0 : i32
    scf.if %2 {
      %cst_77 = arith.constant 0.000000e+00 : f32
      %183 = vector.broadcast %cst_77 : f32 to vector<8x128xf32>
      %c0_78 = arith.constant 0 : index
      %c0_79 = arith.constant 0 : index
      %184 = vector.load %arg6[%c0_78, %c0_79] : memref<8x128xf32, #tpu.memory_space<vmem>>, vector<8x128xf32>
      tpu.vector_store %arg6[%c0_78, %c0_79], %183 {strides = array<i32>} : memref<8x128xf32, #tpu.memory_space<vmem>>, vector<8x128xf32>,
      %cst_80 = arith.constant 0.000000e+00 : f32
      %185 = vector.broadcast %cst_80 : f32 to vector<2x128xf32>
      %c0_81 = arith.constant 0 : index
      %c0_82 = arith.constant 0 : index
      %186 = vector.load %arg7[%c0_81, %c0_82] : memref<2x128xf32, #tpu.memory_space<vmem>>, vector<2x128xf32>
      tpu.vector_store %arg7[%c0_81, %c0_82], %185 {strides = array<i32>} : memref<2x128xf32, #tpu.memory_space<vmem>>, vector<2x128xf32>,
      %cst_83 = arith.constant 0.000000e+00 : f32
      %187 = vector.broadcast %cst_83 : f32 to vector<2x128xf32>
      %c0_84 = arith.constant 0 : index
      %c0_85 = arith.constant 0 : index
      %188 = vector.load %arg8[%c0_84, %c0_85] : memref<2x128xf32, #tpu.memory_space<vmem>>, vector<2x128xf32>
      tpu.vector_store %arg8[%c0_84, %c0_85], %187 {strides = array<i32>} : memref<2x128xf32, #tpu.memory_space<vmem>>, vector<2x128xf32>,
      %cst_86 = arith.constant 0.000000e+00 : f32
      %189 = vector.broadcast %cst_86 : f32 to vector<2x128xf32>
      %c0_87 = arith.constant 0 : index
      %c0_88 = arith.constant 0 : index
      %190 = vector.load %arg9[%c0_87, %c0_88] : memref<2x128xf32, #tpu.memory_space<vmem>>, vector<2x128xf32>
      tpu.vector_store %arg9[%c0_87, %c0_88], %189 {strides = array<i32>} : memref<2x128xf32, #tpu.memory_space<vmem>>, vector<2x128xf32>,
      %cst_89 = arith.constant 0.000000e+00 : f32
      %191 = vector.broadcast %cst_89 : f32 to vector<2x128xf32>
      %c0_90 = arith.constant 0 : index
      %c0_91 = arith.constant 0 : index
      %192 = vector.load %arg10[%c0_90, %c0_91] : memref<2x128xf32, #tpu.memory_space<vmem>>, vector<2x128xf32>
      tpu.vector_store %arg10[%c0_90, %c0_91], %191 {strides = array<i32>} : memref<2x128xf32, #tpu.memory_space<vmem>>, vector<2x128xf32>,
      %cst_92 = arith.constant 0.000000e+00 : f32
      %193 = vector.broadcast %cst_92 : f32 to vector<2x128xf32>
      %c0_93 = arith.constant 0 : index
      %c0_94 = arith.constant 0 : index
      %194 = vector.load %arg11[%c0_93, %c0_94] : memref<2x128xf32, #tpu.memory_space<vmem>>, vector<2x128xf32>
      tpu.vector_store %arg11[%c0_93, %c0_94], %193 {strides = array<i32>} : memref<2x128xf32, #tpu.memory_space<vmem>>, vector<2x128xf32>,
      %cst_95 = arith.constant 0.000000e+00 : f32
      %195 = vector.broadcast %cst_95 : f32 to vector<2x128xf32>
      %c0_96 = arith.constant 0 : index
      %c0_97 = arith.constant 0 : index
      %196 = vector.load %arg12[%c0_96, %c0_97] : memref<2x128xf32, #tpu.memory_space<vmem>>, vector<2x128xf32>
      tpu.vector_store %arg12[%c0_96, %c0_97], %195 {strides = array<i32>} : memref<2x128xf32, #tpu.memory_space<vmem>>, vector<2x128xf32>,
    } else {
    }
    %3 = tpu.iota {dimensions = array<i32: 1>} : vector<1x128xi32>
    %c0_i32_1 = arith.constant 0 : i32
    %4 = vector.broadcast %c0_i32_1 : i32 to vector<1x128xi32>
    %5 = arith.cmpi sgt, %3, %4 : vector<1x128xi32>
    %c127_i32 = arith.constant 127 : i32
    %6 = vector.broadcast %c127_i32 : i32 to vector<1x128xi32>
    %7 = arith.cmpi slt, %3, %6 : vector<1x128xi32>
    %c0 = arith.constant 0 : index
    %c0_2 = arith.constant 0 : index
    %c0_3 = arith.constant 0 : index
    %8 = vector.load %arg2[%c0, %c0_2, %c0_3] : memref<1x64x128xf32, #tpu.memory_space<vmem>>, vector<1x64x128xf32>
    %9 = vector.shape_cast %8 : vector<1x64x128xf32> to vector<64x128xf32>
    %c1_i32 = arith.constant 1 : i32
    %10 = tpu.dynamic_rotate %9 by %c1_i32 dim 1 : vector<64x128xf32>, i32 -> vector<64x128xf32>
    %cst = arith.constant 0.000000e+00 : f32
    %11 = vector.shape_cast %5 : vector<1x128xi1> to vector<1x128xi1>
    %12 = vector.broadcast %11 : vector<1x128xi1> to vector<64x128xi1>
    %13 = vector.broadcast %cst : f32 to vector<64x128xf32>
    %14 = arith.select %12, %10, %13 : vector<64x128xi1>, vector<64x128xf32>
    %c127_i32_4 = arith.constant 127 : i32
    %15 = tpu.dynamic_rotate %9 by %c127_i32_4 dim 1 : vector<64x128xf32>, i32 -> vector<64x128xf32>
    %cst_5 = arith.constant 0.000000e+00 : f32
    %16 = vector.shape_cast %7 : vector<1x128xi1> to vector<1x128xi1>
    %17 = vector.broadcast %16 : vector<1x128xi1> to vector<64x128xi1>
    %18 = vector.broadcast %cst_5 : f32 to vector<64x128xf32>
    %19 = arith.select %17, %15, %18 : vector<64x128xi1>, vector<64x128xf32>
    %cst_6 = arith.constant 2.000000e+00 : f32
    %20 = vector.broadcast %cst_6 : f32 to vector<64x128xf32>
    %21 = arith.mulf %20, %9 : vector<64x128xf32>
    %22 = arith.addf %14, %21 : vector<64x128xf32>
    %23 = arith.addf %22, %19 : vector<64x128xf32>
    %24 = arith.subf %19, %14 : vector<64x128xf32>
    %c1_i32_7 = arith.constant 1 : i32
    %25 = tpu.dynamic_rotate %24 by %c1_i32_7 dim 0 : vector<64x128xf32>, i32 -> vector<64x128xf32>
    %c2_i32 = arith.constant 2 : i32
    %26 = tpu.dynamic_rotate %24 by %c2_i32 dim 0 : vector<64x128xf32>, i32 -> vector<64x128xf32>
    %c2_i32_8 = arith.constant 2 : i32
    %27 = tpu.dynamic_rotate %23 by %c2_i32_8 dim 0 : vector<64x128xf32>, i32 -> vector<64x128xf32>
    %cst_9 = arith.constant 2.000000e+00 : f32
    %28 = vector.broadcast %cst_9 : f32 to vector<64x128xf32>
    %29 = arith.mulf %28, %25 : vector<64x128xf32>
    %30 = arith.addf %26, %29 : vector<64x128xf32>
    %31 = arith.addf %30, %24 : vector<64x128xf32>
    %32 = math.absf %31 : vector<64x128xf32>
    %33 = arith.subf %27, %23 : vector<64x128xf32>
    %34 = math.absf %33 : vector<64x128xf32>
    %35 = arith.addf %32, %34 : vector<64x128xf32>
    %c0_10 = arith.constant 0 : index
    %c0_11 = arith.constant 0 : index
    %36 = vector.load %arg7[%c0_10, %c0_11] : memref<2x128xf32, #tpu.memory_space<vmem>>, vector<2x128xf32>
    %c0_12 = arith.constant 0 : index
    %c0_13 = arith.constant 0 : index
    %37 = vector.load %arg8[%c0_12, %c0_13] : memref<2x128xf32, #tpu.memory_space<vmem>>, vector<2x128xf32>
    %38 = vector.extract_strided_slice %23 {offsets = [0, 0], sizes = [2, 128], strides = [1, 1]} : vector<64x128xf32> to vector<2x128xf32>
    %39 = vector.extract_strided_slice %24 {offsets = [0, 0], sizes = [2, 128], strides = [1, 1]} : vector<64x128xf32> to vector<2x128xf32>
    %40 = vector.extract_strided_slice %37 {offsets = [1, 0], sizes = [1, 128], strides = [1, 1]} : vector<2x128xf32> to vector<1x128xf32>
    %41 = vector.extract_strided_slice %39 {offsets = [0, 0], sizes = [1, 128], strides = [1, 1]} : vector<2x128xf32> to vector<1x128xf32>
    %42 = tpu.concatenate %40, %41 in 0 : vector<1x128xf32>, vector<1x128xf32> -> vector<2x128xf32>
    %cst_14 = arith.constant 2.000000e+00 : f32
    %43 = vector.broadcast %cst_14 : f32 to vector<2x128xf32>
    %44 = arith.mulf %43, %42 : vector<2x128xf32>
    %45 = arith.addf %37, %44 : vector<2x128xf32>
    %46 = arith.addf %45, %39 : vector<2x128xf32>
    %47 = math.absf %46 : vector<2x128xf32>
    %48 = arith.subf %36, %38 : vector<2x128xf32>
    %49 = math.absf %48 : vector<2x128xf32>
    %50 = arith.addf %47, %49 : vector<2x128xf32>
    %51 = vector.extract_strided_slice %23 {offsets = [62, 0], sizes = [2, 128], strides = [1, 1]} : vector<64x128xf32> to vector<2x128xf32>
    %c0_15 = arith.constant 0 : index
    %c0_16 = arith.constant 0 : index
    %52 = vector.load %arg7[%c0_15, %c0_16] : memref<2x128xf32, #tpu.memory_space<vmem>>, vector<2x128xf32>
    tpu.vector_store %arg7[%c0_15, %c0_16], %51 {strides = array<i32>} : memref<2x128xf32, #tpu.memory_space<vmem>>, vector<2x128xf32>,
    %53 = vector.extract_strided_slice %24 {offsets = [62, 0], sizes = [2, 128], strides = [1, 1]} : vector<64x128xf32> to vector<2x128xf32>
    %c0_17 = arith.constant 0 : index
    %c0_18 = arith.constant 0 : index
    %54 = vector.load %arg8[%c0_17, %c0_18] : memref<2x128xf32, #tpu.memory_space<vmem>>, vector<2x128xf32>
    tpu.vector_store %arg8[%c0_17, %c0_18], %53 {strides = array<i32>} : memref<2x128xf32, #tpu.memory_space<vmem>>, vector<2x128xf32>,
    %c0_19 = arith.constant 0 : index
    %c0_20 = arith.constant 0 : index
    %c0_21 = arith.constant 0 : index
    %55 = vector.load %arg3[%c0_19, %c0_20, %c0_21] : memref<1x64x128xf32, #tpu.memory_space<vmem>>, vector<1x64x128xf32>
    %56 = vector.shape_cast %55 : vector<1x64x128xf32> to vector<64x128xf32>
    %c1_i32_22 = arith.constant 1 : i32
    %57 = tpu.dynamic_rotate %56 by %c1_i32_22 dim 1 : vector<64x128xf32>, i32 -> vector<64x128xf32>
    %cst_23 = arith.constant 0.000000e+00 : f32
    %58 = vector.shape_cast %5 : vector<1x128xi1> to vector<1x128xi1>
    %59 = vector.broadcast %58 : vector<1x128xi1> to vector<64x128xi1>
    %60 = vector.broadcast %cst_23 : f32 to vector<64x128xf32>
    %61 = arith.select %59, %57, %60 : vector<64x128xi1>, vector<64x128xf32>
    %c127_i32_24 = arith.constant 127 : i32
    %62 = tpu.dynamic_rotate %56 by %c127_i32_24 dim 1 : vector<64x128xf32>, i32 -> vector<64x128xf32>
    %cst_25 = arith.constant 0.000000e+00 : f32
    %63 = vector.shape_cast %7 : vector<1x128xi1> to vector<1x128xi1>
    %64 = vector.broadcast %63 : vector<1x128xi1> to vector<64x128xi1>
    %65 = vector.broadcast %cst_25 : f32 to vector<64x128xf32>
    %66 = arith.select %64, %62, %65 : vector<64x128xi1>, vector<64x128xf32>
    %cst_26 = arith.constant 2.000000e+00 : f32
    %67 = vector.broadcast %cst_26 : f32 to vector<64x128xf32>
    %68 = arith.mulf %67, %56 : vector<64x128xf32>
    %69 = arith.addf %61, %68 : vector<64x128xf32>
    %70 = arith.addf %69, %66 : vector<64x128xf32>
    %71 = arith.subf %66, %61 : vector<64x128xf32>
    %c1_i32_27 = arith.constant 1 : i32
    %72 = tpu.dynamic_rotate %71 by %c1_i32_27 dim 0 : vector<64x128xf32>, i32 -> vector<64x128xf32>
    %c2_i32_28 = arith.constant 2 : i32
    %73 = tpu.dynamic_rotate %71 by %c2_i32_28 dim 0 : vector<64x128xf32>, i32 -> vector<64x128xf32>
    %c2_i32_29 = arith.constant 2 : i32
    %74 = tpu.dynamic_rotate %70 by %c2_i32_29 dim 0 : vector<64x128xf32>, i32 -> vector<64x128xf32>
    %cst_30 = arith.constant 2.000000e+00 : f32
    %75 = vector.broadcast %cst_30 : f32 to vector<64x128xf32>
    %76 = arith.mulf %75, %72 : vector<64x128xf32>
    %77 = arith.addf %73, %76 : vector<64x128xf32>
    %78 = arith.addf %77, %71 : vector<64x128xf32>
    %79 = math.absf %78 : vector<64x128xf32>
    %80 = arith.subf %74, %70 : vector<64x128xf32>
    %81 = math.absf %80 : vector<64x128xf32>
    %82 = arith.addf %79, %81 : vector<64x128xf32>
    %c0_31 = arith.constant 0 : index
    %c0_32 = arith.constant 0 : index
    %83 = vector.load %arg9[%c0_31, %c0_32] : memref<2x128xf32, #tpu.memory_space<vmem>>, vector<2x128xf32>
    %c0_33 = arith.constant 0 : index
    %c0_34 = arith.constant 0 : index
    %84 = vector.load %arg10[%c0_33, %c0_34] : memref<2x128xf32, #tpu.memory_space<vmem>>, vector<2x128xf32>
    %85 = vector.extract_strided_slice %70 {offsets = [0, 0], sizes = [2, 128], strides = [1, 1]} : vector<64x128xf32> to vector<2x128xf32>
    %86 = vector.extract_strided_slice %71 {offsets = [0, 0], sizes = [2, 128], strides = [1, 1]} : vector<64x128xf32> to vector<2x128xf32>
    %87 = vector.extract_strided_slice %84 {offsets = [1, 0], sizes = [1, 128], strides = [1, 1]} : vector<2x128xf32> to vector<1x128xf32>
    %88 = vector.extract_strided_slice %86 {offsets = [0, 0], sizes = [1, 128], strides = [1, 1]} : vector<2x128xf32> to vector<1x128xf32>
    %89 = tpu.concatenate %87, %88 in 0 : vector<1x128xf32>, vector<1x128xf32> -> vector<2x128xf32>
    %cst_35 = arith.constant 2.000000e+00 : f32
    %90 = vector.broadcast %cst_35 : f32 to vector<2x128xf32>
    %91 = arith.mulf %90, %89 : vector<2x128xf32>
    %92 = arith.addf %84, %91 : vector<2x128xf32>
    %93 = arith.addf %92, %86 : vector<2x128xf32>
    %94 = math.absf %93 : vector<2x128xf32>
    %95 = arith.subf %83, %85 : vector<2x128xf32>
    %96 = math.absf %95 : vector<2x128xf32>
    %97 = arith.addf %94, %96 : vector<2x128xf32>
    %98 = vector.extract_strided_slice %70 {offsets = [62, 0], sizes = [2, 128], strides = [1, 1]} : vector<64x128xf32> to vector<2x128xf32>
    %c0_36 = arith.constant 0 : index
    %c0_37 = arith.constant 0 : index
    %99 = vector.load %arg9[%c0_36, %c0_37] : memref<2x128xf32, #tpu.memory_space<vmem>>, vector<2x128xf32>
    tpu.vector_store %arg9[%c0_36, %c0_37], %98 {strides = array<i32>} : memref<2x128xf32, #tpu.memory_space<vmem>>, vector<2x128xf32>,
    %100 = vector.extract_strided_slice %71 {offsets = [62, 0], sizes = [2, 128], strides = [1, 1]} : vector<64x128xf32> to vector<2x128xf32>
    %c0_38 = arith.constant 0 : index
    %c0_39 = arith.constant 0 : index
    %101 = vector.load %arg10[%c0_38, %c0_39] : memref<2x128xf32, #tpu.memory_space<vmem>>, vector<2x128xf32>
    tpu.vector_store %arg10[%c0_38, %c0_39], %100 {strides = array<i32>} : memref<2x128xf32, #tpu.memory_space<vmem>>, vector<2x128xf32>,
    %c0_40 = arith.constant 0 : index
    %c0_41 = arith.constant 0 : index
    %c0_42 = arith.constant 0 : index
    %102 = vector.load %arg4[%c0_40, %c0_41, %c0_42] : memref<1x64x128xf32, #tpu.memory_space<vmem>>, vector<1x64x128xf32>
    %103 = vector.shape_cast %102 : vector<1x64x128xf32> to vector<64x128xf32>
    %c1_i32_43 = arith.constant 1 : i32
    %104 = tpu.dynamic_rotate %103 by %c1_i32_43 dim 1 : vector<64x128xf32>, i32 -> vector<64x128xf32>
    %cst_44 = arith.constant 0.000000e+00 : f32
    %105 = vector.shape_cast %5 : vector<1x128xi1> to vector<1x128xi1>
    %106 = vector.broadcast %105 : vector<1x128xi1> to vector<64x128xi1>
    %107 = vector.broadcast %cst_44 : f32 to vector<64x128xf32>
    %108 = arith.select %106, %104, %107 : vector<64x128xi1>, vector<64x128xf32>
    %c127_i32_45 = arith.constant 127 : i32
    %109 = tpu.dynamic_rotate %103 by %c127_i32_45 dim 1 : vector<64x128xf32>, i32 -> vector<64x128xf32>
    %cst_46 = arith.constant 0.000000e+00 : f32
    %110 = vector.shape_cast %7 : vector<1x128xi1> to vector<1x128xi1>
    %111 = vector.broadcast %110 : vector<1x128xi1> to vector<64x128xi1>
    %112 = vector.broadcast %cst_46 : f32 to vector<64x128xf32>
    %113 = arith.select %111, %109, %112 : vector<64x128xi1>, vector<64x128xf32>
    %cst_47 = arith.constant 2.000000e+00 : f32
    %114 = vector.broadcast %cst_47 : f32 to vector<64x128xf32>
    %115 = arith.mulf %114, %103 : vector<64x128xf32>
    %116 = arith.addf %108, %115 : vector<64x128xf32>
    %117 = arith.addf %116, %113 : vector<64x128xf32>
    %118 = arith.subf %113, %108 : vector<64x128xf32>
    %c1_i32_48 = arith.constant 1 : i32
    %119 = tpu.dynamic_rotate %118 by %c1_i32_48 dim 0 : vector<64x128xf32>, i32 -> vector<64x128xf32>
    %c2_i32_49 = arith.constant 2 : i32
    %120 = tpu.dynamic_rotate %118 by %c2_i32_49 dim 0 : vector<64x128xf32>, i32 -> vector<64x128xf32>
    %c2_i32_50 = arith.constant 2 : i32
    %121 = tpu.dynamic_rotate %117 by %c2_i32_50 dim 0 : vector<64x128xf32>, i32 -> vector<64x128xf32>
    %cst_51 = arith.constant 2.000000e+00 : f32
    %122 = vector.broadcast %cst_51 : f32 to vector<64x128xf32>
    %123 = arith.mulf %122, %119 : vector<64x128xf32>
    %124 = arith.addf %120, %123 : vector<64x128xf32>
    %125 = arith.addf %124, %118 : vector<64x128xf32>
    %126 = math.absf %125 : vector<64x128xf32>
    %127 = arith.subf %121, %117 : vector<64x128xf32>
    %128 = math.absf %127 : vector<64x128xf32>
    %129 = arith.addf %126, %128 : vector<64x128xf32>
    %c0_52 = arith.constant 0 : index
    %c0_53 = arith.constant 0 : index
    %130 = vector.load %arg11[%c0_52, %c0_53] : memref<2x128xf32, #tpu.memory_space<vmem>>, vector<2x128xf32>
    %c0_54 = arith.constant 0 : index
    %c0_55 = arith.constant 0 : index
    %131 = vector.load %arg12[%c0_54, %c0_55] : memref<2x128xf32, #tpu.memory_space<vmem>>, vector<2x128xf32>
    %132 = vector.extract_strided_slice %117 {offsets = [0, 0], sizes = [2, 128], strides = [1, 1]} : vector<64x128xf32> to vector<2x128xf32>
    %133 = vector.extract_strided_slice %118 {offsets = [0, 0], sizes = [2, 128], strides = [1, 1]} : vector<64x128xf32> to vector<2x128xf32>
    %134 = vector.extract_strided_slice %131 {offsets = [1, 0], sizes = [1, 128], strides = [1, 1]} : vector<2x128xf32> to vector<1x128xf32>
    %135 = vector.extract_strided_slice %133 {offsets = [0, 0], sizes = [1, 128], strides = [1, 1]} : vector<2x128xf32> to vector<1x128xf32>
    %136 = tpu.concatenate %134, %135 in 0 : vector<1x128xf32>, vector<1x128xf32> -> vector<2x128xf32>
    %cst_56 = arith.constant 2.000000e+00 : f32
    %137 = vector.broadcast %cst_56 : f32 to vector<2x128xf32>
    %138 = arith.mulf %137, %136 : vector<2x128xf32>
    %139 = arith.addf %131, %138 : vector<2x128xf32>
    %140 = arith.addf %139, %133 : vector<2x128xf32>
    %141 = math.absf %140 : vector<2x128xf32>
    %142 = arith.subf %130, %132 : vector<2x128xf32>
    %143 = math.absf %142 : vector<2x128xf32>
    %144 = arith.addf %141, %143 : vector<2x128xf32>
    %145 = vector.extract_strided_slice %117 {offsets = [62, 0], sizes = [2, 128], strides = [1, 1]} : vector<64x128xf32> to vector<2x128xf32>
    %c0_57 = arith.constant 0 : index
    %c0_58 = arith.constant 0 : index
    %146 = vector.load %arg11[%c0_57, %c0_58] : memref<2x128xf32, #tpu.memory_space<vmem>>, vector<2x128xf32>
    tpu.vector_store %arg11[%c0_57, %c0_58], %145 {strides = array<i32>} : memref<2x128xf32, #tpu.memory_space<vmem>>, vector<2x128xf32>,
    %147 = vector.extract_strided_slice %118 {offsets = [62, 0], sizes = [2, 128], strides = [1, 1]} : vector<64x128xf32> to vector<2x128xf32>
    %c0_59 = arith.constant 0 : index
    %c0_60 = arith.constant 0 : index
    %148 = vector.load %arg12[%c0_59, %c0_60] : memref<2x128xf32, #tpu.memory_space<vmem>>, vector<2x128xf32>
    tpu.vector_store %arg12[%c0_59, %c0_60], %147 {strides = array<i32>} : memref<2x128xf32, #tpu.memory_space<vmem>>, vector<2x128xf32>,
    %149 = arith.maximumf %35, %82 : vector<64x128xf32>
    %150 = arith.subf %149, %129 : vector<64x128xf32>
    %151 = math.absf %150 : vector<64x128xf32>
    %152 = tpu.iota {dimensions = array<i32: 0>} : vector<64x1xi32>
    %c2_i32_61 = arith.constant 2 : i32
    %153 = vector.broadcast %c2_i32_61 : i32 to vector<64x1xi32>
    %154 = arith.cmpi sge, %152, %153 : vector<64x1xi32>
    %cst_62 = arith.constant 0.000000e+00 : f32
    %155 = vector.shape_cast %154 : vector<64x1xi1> to vector<64x1xi1>
    %156 = vector.broadcast %155 : vector<64x1xi1> to vector<64x128xi1>
    %157 = vector.broadcast %cst_62 : f32 to vector<64x128xf32>
    %158 = arith.select %156, %151, %157 : vector<64x128xi1>, vector<64x128xf32>
    %c0_63 = arith.constant 0 : index
    %c0_64 = arith.constant 0 : index
    %159 = vector.load %arg6[%c0_63, %c0_64] : memref<8x128xf32, #tpu.memory_space<vmem>>, vector<8x128xf32>
    %160 = vector.shape_cast %158 : vector<64x128xf32> to vector<8x8x128xf32>
    %cst_65 = arith.constant dense<0.000000e+00> : vector<8x128xf32>
    %161 = vector.multi_reduction <add>, %160, %cst_65 [0] : vector<8x8x128xf32> to vector<8x128xf32>
    %162 = arith.addf %159, %161 : vector<8x128xf32>
    %c0_66 = arith.constant 0 : index
    %c0_67 = arith.constant 0 : index
    %163 = vector.load %arg6[%c0_66, %c0_67] : memref<8x128xf32, #tpu.memory_space<vmem>>, vector<8x128xf32>
    tpu.vector_store %arg6[%c0_66, %c0_67], %162 {strides = array<i32>} : memref<8x128xf32, #tpu.memory_space<vmem>>, vector<8x128xf32>,
    %164 = arith.maximumf %50, %97 : vector<2x128xf32>
    %165 = arith.subf %164, %144 : vector<2x128xf32>
    %166 = math.absf %165 : vector<2x128xf32>
    %167 = tpu.iota {dimensions = array<i32: 0>} : vector<2x1xi32>
    %c1_i32_68 = arith.constant 1 : i32
    %168 = vector.broadcast %c1_i32_68 : i32 to vector<2x1xi32>
    %169 = arith.cmpi sge, %167, %168 : vector<2x1xi32>
    %c0_i32_69 = arith.constant 0 : i32
    %170 = arith.cmpi sgt, %arg1, %c0_i32_69 : i32
    %171 = vector.broadcast %170 : i1 to vector<2x1xi1>
    %172 = arith.ori %169, %171 : vector<2x1xi1>
    %cst_70 = arith.constant 0.000000e+00 : f32
    %173 = vector.shape_cast %172 : vector<2x1xi1> to vector<2x1xi1>
    %174 = vector.broadcast %173 : vector<2x1xi1> to vector<2x128xi1>
    %175 = vector.broadcast %cst_70 : f32 to vector<2x128xf32>
    %176 = arith.select %174, %166, %175 : vector<2x128xi1>, vector<2x128xf32>
    %c0_71 = arith.constant 0 : index
    %c0_72 = arith.constant 0 : index
    %177 = vector.load %arg6[%c0_71, %c0_72] : memref<8x128xf32, #tpu.memory_space<vmem>>, vector<2x128xf32>
    %178 = arith.addf %177, %176 : vector<2x128xf32>
    %c0_73 = arith.constant 0 : index
    %c0_74 = arith.constant 0 : index
    %179 = vector.load %arg6[%c0_73, %c0_74] : memref<8x128xf32, #tpu.memory_space<vmem>>, vector<2x128xf32>
    tpu.vector_store %arg6[%c0_73, %c0_74], %178 {strides = array<i32>} : memref<8x128xf32, #tpu.memory_space<vmem>>, vector<2x128xf32>,
    %c0_i32_75 = arith.constant 0 : i32
    %180 = arith.cmpi eq, %arg1, %c0_i32_75 : i32
    %181 = arith.extui %180 : i1 to i32
    %c0_i32_76 = arith.constant 0 : i32
    %182 = arith.cmpi ne, %181, %c0_i32_76 : i32
    scf.if %182 {
      %c0_77 = arith.constant 0 : index
      %c0_78 = arith.constant 0 : index
      %183 = vector.load %arg8[%c0_77, %c0_78] : memref<2x128xf32, #tpu.memory_space<vmem>>, vector<1x128xf32>
      %c1 = arith.constant 1 : index
      %c0_79 = arith.constant 0 : index
      %184 = vector.load %arg8[%c1, %c0_79] : memref<2x128xf32, #tpu.memory_space<vmem>>, vector<1x128xf32>
      %cst_80 = arith.constant 2.000000e+00 : f32
      %185 = vector.broadcast %cst_80 : f32 to vector<1x128xf32>
      %186 = arith.mulf %185, %184 : vector<1x128xf32>
      %187 = arith.addf %183, %186 : vector<1x128xf32>
      %c0_81 = arith.constant 0 : index
      %c0_82 = arith.constant 0 : index
      %188 = vector.load %arg7[%c0_81, %c0_82] : memref<2x128xf32, #tpu.memory_space<vmem>>, vector<1x128xf32>
      %189 = math.absf %187 : vector<1x128xf32>
      %190 = math.absf %188 : vector<1x128xf32>
      %191 = arith.addf %189, %190 : vector<1x128xf32>
      %c0_83 = arith.constant 0 : index
      %c0_84 = arith.constant 0 : index
      %192 = vector.load %arg10[%c0_83, %c0_84] : memref<2x128xf32, #tpu.memory_space<vmem>>, vector<1x128xf32>
      %c1_85 = arith.constant 1 : index
      %c0_86 = arith.constant 0 : index
      %193 = vector.load %arg10[%c1_85, %c0_86] : memref<2x128xf32, #tpu.memory_space<vmem>>, vector<1x128xf32>
      %cst_87 = arith.constant 2.000000e+00 : f32
      %194 = vector.broadcast %cst_87 : f32 to vector<1x128xf32>
      %195 = arith.mulf %194, %193 : vector<1x128xf32>
      %196 = arith.addf %192, %195 : vector<1x128xf32>
      %c0_88 = arith.constant 0 : index
      %c0_89 = arith.constant 0 : index
      %197 = vector.load %arg9[%c0_88, %c0_89] : memref<2x128xf32, #tpu.memory_space<vmem>>, vector<1x128xf32>
      %198 = math.absf %196 : vector<1x128xf32>
      %199 = math.absf %197 : vector<1x128xf32>
      %200 = arith.addf %198, %199 : vector<1x128xf32>
      %201 = arith.maximumf %191, %200 : vector<1x128xf32>
      %c0_90 = arith.constant 0 : index
      %c0_91 = arith.constant 0 : index
      %202 = vector.load %arg12[%c0_90, %c0_91] : memref<2x128xf32, #tpu.memory_space<vmem>>, vector<1x128xf32>
      %c1_92 = arith.constant 1 : index
      %c0_93 = arith.constant 0 : index
      %203 = vector.load %arg12[%c1_92, %c0_93] : memref<2x128xf32, #tpu.memory_space<vmem>>, vector<1x128xf32>
      %cst_94 = arith.constant 2.000000e+00 : f32
      %204 = vector.broadcast %cst_94 : f32 to vector<1x128xf32>
      %205 = arith.mulf %204, %203 : vector<1x128xf32>
      %206 = arith.addf %202, %205 : vector<1x128xf32>
      %c0_95 = arith.constant 0 : index
      %c0_96 = arith.constant 0 : index
      %207 = vector.load %arg11[%c0_95, %c0_96] : memref<2x128xf32, #tpu.memory_space<vmem>>, vector<1x128xf32>
      %208 = math.absf %206 : vector<1x128xf32>
      %209 = math.absf %207 : vector<1x128xf32>
      %210 = arith.addf %208, %209 : vector<1x128xf32>
      %211 = arith.subf %201, %210 : vector<1x128xf32>
      %212 = math.absf %211 : vector<1x128xf32>
      %213 = vector.shape_cast %212 : vector<1x128xf32> to vector<1x1x128xf32>
      %cst_97 = arith.constant dense<0.000000e+00> : vector<1xf32>
      %214 = vector.multi_reduction <add>, %213, %cst_97 [1, 2] : vector<1x1x128xf32> to vector<1xf32>
      %215 = vector.shape_cast %214 : vector<1xf32> to vector<1x1x1xf32>
      %216 = vector.extract %215[0, 0, 0] : f32 from vector<1x1x1xf32>
      %c0_98 = arith.constant 0 : index
      %c0_99 = arith.constant 0 : index
      %217 = vector.load %arg6[%c0_98, %c0_99] : memref<8x128xf32, #tpu.memory_space<vmem>>, vector<8x128xf32>
      %218 = vector.shape_cast %217 : vector<8x128xf32> to vector<1x8x128xf32>
      %cst_100 = arith.constant dense<0.000000e+00> : vector<1xf32>
      %219 = vector.multi_reduction <add>, %218, %cst_100 [1, 2] : vector<1x8x128xf32> to vector<1xf32>
      %220 = vector.shape_cast %219 : vector<1xf32> to vector<1x1x1xf32>
      %221 = vector.extract %220[0, 0, 0] : f32 from vector<1x1x1xf32>
      %222 = arith.addf %221, %216 : f32
      %cst_101 = arith.constant 1.22070313E-4 : f32
      %223 = arith.mulf %222, %cst_101 : f32
      %224 = vector.broadcast %223 : f32 to vector<1x1x1xf32>
      %c0_102 = arith.constant 0 : index
      %c0_103 = arith.constant 0 : index
      %c0_104 = arith.constant 0 : index
      %225 = vector.load %arg5[%c0_102, %c0_103, %c0_104] : memref<1x1x1xf32, #tpu.memory_space<vmem>>, vector<1x1x1xf32>
      tpu.vector_store %arg5[%c0_102, %c0_103, %c0_104], %224 {strides = array<i32>} : memref<1x1x1xf32, #tpu.memory_space<vmem>>, vector<1x1x1xf32>,
    } else {
    }
    return
  }
  func.func @transform_0(%arg0: i32, %arg1: i32) -> (i32, i32, i32) {
    %c0_i32 = arith.constant 0 : i32
    %c0_i32_0 = arith.constant 0 : i32
    return %arg0, %arg1, %c0_i32 : i32, i32, i32
  }
  func.func @transform_1(%arg0: i32, %arg1: i32) -> (i32, i32, i32) {
    %c0_i32 = arith.constant 0 : i32
    %c0_i32_0 = arith.constant 0 : i32
    return %arg0, %arg1, %c0_i32 : i32, i32, i32
  }
  func.func @transform_2(%arg0: i32, %arg1: i32) -> (i32, i32, i32) {
    %c0_i32 = arith.constant 0 : i32
    %c0_i32_0 = arith.constant 0 : i32
    return %arg0, %arg1, %c0_i32 : i32, i32, i32
  }
  func.func @transform_3(%arg0: i32, %arg1: i32) -> (i32, i32, i32) {
    %c0_i32 = arith.constant 0 : i32
    %c0_i32_0 = arith.constant 0 : i32
    %c0_i32_1 = arith.constant 0 : i32
    return %arg0, %c0_i32, %c0_i32_0 : i32, i32, i32
  }
}

</mosaic_0001>

<llo_original>
// kernel: tpu_custom_call.1
$region0: #{tpu_custom_call.1}
  #allocation0 [shape = 'u32[]', space=smem, size = 0x4, offset = 0x4, fixed_abs, tag = 'smem constant byte address 0x4 - core index']
  #allocation1 [shape = 'u32[72,128]{1,0:T(1,128)}', space=vmem, size = 0x9000, scoped, tag = 'internal scratch']
  #allocation2 [shape = 'f32[8,128]{1,0:T(8,128)}', space=vmem, size = 0x1000, scoped, tag = 'scratch operand']
  #allocation3 [shape = 'f32[2,128]{1,0:T(2,128)}', space=vmem, size = 0x400, scoped, tag = 'scratch operand']
  #allocation4 [shape = 'f32[2,128]{1,0:T(2,128)}', space=vmem, size = 0x400, scoped, tag = 'scratch operand']
  #allocation5 [shape = 'f32[2,128]{1,0:T(2,128)}', space=vmem, size = 0x400, scoped, tag = 'scratch operand']
  #allocation6 [shape = 'f32[2,128]{1,0:T(2,128)}', space=vmem, size = 0x400, scoped, tag = 'scratch operand']
  #allocation7 [shape = 'f32[2,128]{1,0:T(2,128)}', space=vmem, size = 0x400, scoped, tag = 'scratch operand']
  #allocation8 [shape = 'f32[2,128]{1,0:T(2,128)}', space=vmem, size = 0x400, scoped, tag = 'scratch operand']
  %s0 = inlined_call_operand.hbm [shape: f32[2,64,128], index: 0, kind: input, shape index: {}]
  %s1 = inlined_call_operand.hbm [shape: f32[2,64,128], index: 1, kind: input, shape index: {}]
  %s2 = inlined_call_operand.hbm [shape: f32[2,64,128], index: 2, kind: input, shape index: {}]
  %s3 = inlined_call_operand.vmem [shape: f32[2,1,1], index: 3, kind: output, shape index: {}]
  %s4 = sld [smem:[#allocation0]]
  $region65: #{tpu_custom_call.1} parent=0
    _
  %s6 = ssub.s32 1, %s4
  %s7 = scalar_select 0, %s6, %s4
  $region1: #{tpu_custom_call.1} parent=0
    #allocation9 [shape = 'u8[65536]{0}', space=vmem, size = 0x10000, scoped, tag = 'input window, operand 0']
    #allocation10 [shape = 's32[2]{0}', space=sflag, size = 0x8, scoped, tag = 'scoped memory for tpu_custom_call.1']
    #allocation11 [shape = 'u8[65536]{0}', space=vmem, size = 0x10000, scoped, tag = 'input window, operand 1']
    #allocation12 [shape = 's32[2]{0}', space=sflag, size = 0x8, scoped, tag = 'scoped memory for tpu_custom_call.1']
    #allocation13 [shape = 'u8[65536]{0}', space=vmem, size = 0x10000, scoped, tag = 'input window, operand 2']
    %8 = vsyncpa [#allocation10], 0
    %s9 = scalar_lea.sflag [#allocation10], 1
    %10 = vsyncpa %s9, 0
    %11 = vsyncpa [#allocation12], 0
    %s12 = scalar_lea.sflag [#allocation12], 1
    %13 = vsyncpa %s12, 0
    loop: start=0, step=1, limit=4
    $region2: #{tpu_custom_call.1} parent=1 // loop_pre_header
      _
    $region3: #{tpu_custom_call.1} parent=1 // loop_header
      %s15 = sphi 0, %s19
      %p16 = scmp.ge.s32.totalorder %s15, 4
      %s22 = sphi 0, %s34
      %s23 = sphi 0, %s30
      %s24 = sphi 0, %s22
      %s25 = sphi 0, %s23
      %s26 = sphi 0, %s24
      %s27 = sphi 0, %s25
      %s39 = sphi 0, %s41
      %s42 = sphi 0, %s39
      %s43 = sphi 0, %s42
      %s59 = sphi 0, %s43
      %s67 = sphi 0, %s69
      %s70 = sphi 0, %s67
      %s71 = sphi 0, %s70
      %s87 = sphi 0, %s71
      %s95 = sphi 0, %s97
      %s98 = sphi 0, %s95
      %s99 = sphi 0, %s98
      %s115 = sphi 0, %s99
      %s121 = sphi 0, %s123
      %s124 = sphi 0, %s121
      %s125 = sphi 0, %s124
      %s141 = sphi 0, %s125
    $region4: #{tpu_custom_call.1} parent=1 // loop_header_branch
      %18 = sbr.rel (%p16) target = $region8
    $region5: #{tpu_custom_call.1} parent=1 // loop_body
      %s20 = ssub.s32 %s15, 1
      %s21 = ssub.s32 %s15, 2
      %s28 = sadd.s32 1, %s23
      %p29 = scmp.ge.s32.totalorder %s28, 1
      %s30 = scalar_select %p29, 0, %s28
      %s31 = sadd.s32 1, %s22
      %s32 = scalar_select %p29, %s31, %s22
      %p33 = scmp.ge.s32.totalorder %s32, 2
      %s34 = scalar_select %p33, 0, %s32
      %s35 = ssub.s32 %s22, %s34
      %s36 = ssub.s32 %s23, %s30
      %s37 = sor.u32 %s35, %s36
      %p38 = scmp.eq.s32.totalorder %s37, 0
      %s40 = sadd.s32 %s39, 1
      %s41 = scalar_select %p38, %s39, %s40
      %p44 = pneg %p38
      %p45 = scmp.eq.s32.totalorder %s15, 1
      %p46 = por %p44, %p45
      %p47 = scmp.ne.s32.totalorder %s39, %s42
      %p48 = scmp.eq.s32.totalorder %s15, 0
      %p49 = por %p47, %p48
      %p50 = scmp.ne.s32.totalorder %s39, %s42
      %p51 = scmp.eq.s32.totalorder %s20, 1
      %p52 = por %p50, %p51
      %p53 = scmp.ne.s32.totalorder %s42, %s43
      %p54 = scmp.eq.s32.totalorder %s20, 0
      %p55 = por %p53, %p54
      %p56 = scmp.ne.s32.totalorder %s42, %s43
      %p57 = scmp.eq.s32.totalorder %s21, 1
      %p58 = por %p56, %p57
      %p60 = scmp.ne.s32.totalorder %s43, %s59
      %p61 = scmp.eq.s32.totalorder %s21, 0
      %p62 = por %p60, %p61
      %s63 = ssub.s32 %s22, %s34
      %s64 = ssub.s32 %s23, %s30
      %s65 = sor.u32 %s63, %s64
      %p66 = scmp.eq.s32.totalorder %s65, 0
      %s68 = sadd.s32 %s67, 1
      %s69 = scalar_select %p66, %s67, %s68
      %p72 = pneg %p66
      %p73 = scmp.eq.s32.totalorder %s15, 1
      %p74 = por %p72, %p73
      %p75 = scmp.ne.s32.totalorder %s67, %s70
      %p76 = scmp.eq.s32.totalorder %s15, 0
      %p77 = por %p75, %p76
      %p78 = scmp.ne.s32.totalorder %s67, %s70
      %p79 = scmp.eq.s32.totalorder %s20, 1
      %p80 = por %p78, %p79
      %p81 = scmp.ne.s32.totalorder %s70, %s71
      %p82 = scmp.eq.s32.totalorder %s20, 0
      %p83 = por %p81, %p82
      %p84 = scmp.ne.s32.totalorder %s70, %s71
      %p85 = scmp.eq.s32.totalorder %s21, 1
      %p86 = por %p84, %p85
      %p88 = scmp.ne.s32.totalorder %s71, %s87
      %p89 = scmp.eq.s32.totalorder %s21, 0
      %p90 = por %p88, %p89
      %s91 = ssub.s32 %s22, %s34
      %s92 = ssub.s32 %s23, %s30
      %s93 = sor.u32 %s91, %s92
      %p94 = scmp.eq.s32.totalorder %s93, 0
      %s96 = sadd.s32 %s95, 1
      %s97 = scalar_select %p94, %s95, %s96
      %p100 = pneg %p94
      %p101 = scmp.eq.s32.totalorder %s15, 1
      %p102 = por %p100, %p101
      %p103 = scmp.ne.s32.totalorder %s95, %s98
      %p104 = scmp.eq.s32.totalorder %s15, 0
      %p105 = por %p103, %p104
      %p106 = scmp.ne.s32.totalorder %s95, %s98
      %p107 = scmp.eq.s32.totalorder %s20, 1
      %p108 = por %p106, %p107
      %p109 = scmp.ne.s32.totalorder %s98, %s99
      %p110 = scmp.eq.s32.totalorder %s20, 0
      %p111 = por %p109, %p110
      %p112 = scmp.ne.s32.totalorder %s98, %s99
      %p113 = scmp.eq.s32.totalorder %s21, 1
      %p114 = por %p112, %p113
      %p116 = scmp.ne.s32.totalorder %s99, %s115
      %p117 = scmp.eq.s32.totalorder %s21, 0
      %p118 = por %p116, %p117
      %s119 = ssub.s32 %s22, %s34
      %p120 = scmp.eq.s32.totalorder %s119, 0
      %s122 = sadd.s32 %s121, 1
      %s123 = scalar_select %p120, %s121, %s122
      %p126 = pneg %p120
      %p127 = scmp.eq.s32.totalorder %s15, 1
      %p128 = por %p126, %p127
      %p129 = scmp.ne.s32.totalorder %s121, %s124
      %p130 = scmp.eq.s32.totalorder %s15, 0
      %p131 = por %p129, %p130
      %p132 = scmp.ne.s32.totalorder %s121, %s124
      %p133 = scmp.eq.s32.totalorder %s20, 1
      %p134 = por %p132, %p133
      %p135 = scmp.ne.s32.totalorder %s124, %s125
      %p136 = scmp.eq.s32.totalorder %s20, 0
      %p137 = por %p135, %p136
      %p138 = scmp.ne.s32.totalorder %s124, %s125
      %p139 = scmp.eq.s32.totalorder %s21, 1
      %p140 = por %p138, %p139
      %p142 = scmp.ne.s32.totalorder %s125, %s141
      %p143 = scmp.eq.s32.totalorder %s21, 0
      %p144 = por %p142, %p143
      %p145 = scmp.le.s32.totalorder 1, %s15
      %p146 = scmp.lt.s32.totalorder %s15, 3
      %p147 = pnand %p145, %p146
      %p148 = pneg %p147
      // Predicated region
      $region9: #{tpu_custom_call.1} parent=5 // pred_check
        _
      $region10: #{tpu_custom_call.1} parent=5 // pred_check_branch
        %150 = sbr.rel (%p147) target = $region12
      $region11: #{tpu_custom_call.1} parent=5 // pred_region
        %s151 = ssub.s32 %s15, 1
      $region12: #{tpu_custom_call.1} parent=5 // pred_fallthru
        _
      %p152 = scmp.lt.s32.totalorder %s15, 2
      // Predicated region
      $region13: #{tpu_custom_call.1} parent=5 // pred_check
        %p153 = pneg %p152
      $region14: #{tpu_custom_call.1} parent=5 // pred_check_branch
        %155 = sbr.rel (%p153) target = $region16
      $region15: #{tpu_custom_call.1} parent=5 // pred_region
        // Predicated region
        $region17: #{tpu_custom_call.1} parent=15 // pred_check
          %p156 = pneg %p49
        $region18: #{tpu_custom_call.1} parent=15 // pred_check_branch
          %158 = sbr.rel (%p156) target = $region20
        $region19: #{tpu_custom_call.1} parent=15 // pred_region
          %s159 = sand.u32 %s39, 1
          %s160 = scalar_lea.sflag [#allocation10], %s159
          %s161 = sand.u32 %s39, 1
          %s162 = smul.addr %s161, 64
          %s163 = scalar_lea.vmem [#allocation9], %s162
          %s164 = smul.u32 8, %s23
          %166 = vsyncadd %s160, 0
          %s167 = smul.addr %s22, 8
          %s168 = sadd.s32 %s164, %s167
          %s169 = smul.addr %s168, 8
          %s170 = scalar_lea.hbm %s0, %s169
          %s171 = sshll.u32 %s170, 4
          %s172 = int_to_ptr.hbm [resolvable:$true] %s171
          %s173 = sshll.u32 %s163, 4
          %s174 = int_to_ptr.vmem [resolvable:$true] %s173
          %179 = dma.hbm_to_vmem [thread:$0]  %s172, 1024, %s174, %s160, 128, 128, 8
        $region20: #{tpu_custom_call.1} parent=15 // pred_fallthru
          _
        // Predicated region
        $region21: #{tpu_custom_call.1} parent=15 // pred_check
          %p180 = pneg %p77
        $region22: #{tpu_custom_call.1} parent=15 // pred_check_branch
          %182 = sbr.rel (%p180) target = $region24
        $region23: #{tpu_custom_call.1} parent=15 // pred_region
          %s183 = sand.u32 %s15, 1
          %s184 = scalar_lea.sflag [#allocation12], %s183
          %s185 = sand.u32 %s67, 1
          %s186 = smul.addr %s185, 64
          %s187 = scalar_lea.vmem [#allocation11], %s186
          %s188 = smul.u32 8, %s23
          %190 = vsyncadd %s184, 0
          %s191 = smul.addr %s22, 8
          %s192 = sadd.s32 %s188, %s191
          %s193 = smul.addr %s192, 8
          %s194 = scalar_lea.hbm %s1, %s193
          %s195 = sshll.u32 %s194, 4
          %s196 = int_to_ptr.hbm [resolvable:$true] %s195
          %s197 = sshll.u32 %s187, 4
          %s198 = int_to_ptr.vmem [resolvable:$true] %s197
          %203 = dma.hbm_to_vmem [thread:$0]  %s196, 1024, %s198, %s184, 128, 128, 8
        $region24: #{tpu_custom_call.1} parent=15 // pred_fallthru
          _
        // Predicated region
        $region25: #{tpu_custom_call.1} parent=15 // pred_check
          %p204 = pneg %p105
        $region26: #{tpu_custom_call.1} parent=15 // pred_check_branch
          %206 = sbr.rel (%p204) target = $region28
        $region27: #{tpu_custom_call.1} parent=15 // pred_region
          %s207 = sand.u32 %s15, 1
          %s208 = scalar_lea.sflag [#allocation12], %s207
          %s209 = sand.u32 %s95, 1
          %s210 = smul.addr %s209, 64
          %s211 = scalar_lea.vmem [#allocation13], %s210
          %s212 = smul.u32 8, %s23
          %214 = vsyncadd %s208, 0
          %s215 = smul.addr %s22, 8
          %s216 = sadd.s32 %s212, %s215
          %s217 = smul.addr %s216, 8
          %s218 = scalar_lea.hbm %s2, %s217
          %s219 = sshll.u32 %s218, 4
          %s220 = int_to_ptr.hbm [resolvable:$true] %s219
          %s221 = sshll.u32 %s211, 4
          %s222 = int_to_ptr.vmem [resolvable:$true] %s221
          %227 = dma.hbm_to_vmem [thread:$0]  %s220, 1024, %s222, %s208, 128, 128, 8
        $region28: #{tpu_custom_call.1} parent=15 // pred_fallthru
          _
      $region16: #{tpu_custom_call.1} parent=5 // pred_fallthru
        _
      %p228 = scmp.le.s32.totalorder 1, %s15
      %p229 = scmp.lt.s32.totalorder %s15, 3
      %p230 = pnand %p228, %p229
      %p231 = pneg %p230
      // Predicated region
      $region29: #{tpu_custom_call.1} parent=5 // pred_check
        _
      $region30: #{tpu_custom_call.1} parent=5 // pred_check_branch
        %233 = sbr.rel (%p230) target = $region32
      $region31: #{tpu_custom_call.1} parent=5 // pred_region
        %s234 = ssub.s32 %s15, 1
        %s235 = sand.u32 %s42, 1
        %s236 = scalar_lea.sflag [#allocation10], %s235
        %s237 = sand.u32 %s42, 1
        %s238 = smul.addr %s237, 64
        %s239 = scalar_lea.vmem [#allocation9], %s238
        // Predicated region
        $region33: #{tpu_custom_call.1} parent=31 // pred_check
          %p240 = pneg %p55
        $region34: #{tpu_custom_call.1} parent=31 // pred_check_branch
          %242 = sbr.rel (%p240) target = $region36
        $region35: #{tpu_custom_call.1} parent=31 // pred_region
          %244 = dma.done %s236, 1024
        $region36: #{tpu_custom_call.1} parent=31 // pred_fallthru
          _
        %s245 = sand.u32 %s20, 1
        %s246 = scalar_lea.sflag [#allocation12], %s245
        %s247 = sand.u32 %s70, 1
        %s248 = smul.addr %s247, 64
        %s249 = scalar_lea.vmem [#allocation11], %s248
        // Predicated region
        $region37: #{tpu_custom_call.1} parent=31 // pred_check
          %p250 = pneg %p83
        $region38: #{tpu_custom_call.1} parent=31 // pred_check_branch
          %252 = sbr.rel (%p250) target = $region40
        $region39: #{tpu_custom_call.1} parent=31 // pred_region
          %254 = dma.done %s246, 1024
        $region40: #{tpu_custom_call.1} parent=31 // pred_fallthru
          _
        %s255 = sand.u32 %s20, 1
        %s256 = scalar_lea.sflag [#allocation12], %s255
        %s257 = sand.u32 %s98, 1
        %s258 = smul.addr %s257, 64
        %s259 = scalar_lea.vmem [#allocation13], %s258
        // Predicated region
        $region41: #{tpu_custom_call.1} parent=31 // pred_check
          %p260 = pneg %p111
        $region42: #{tpu_custom_call.1} parent=31 // pred_check_branch
          %262 = sbr.rel (%p260) target = $region44
        $region43: #{tpu_custom_call.1} parent=31 // pred_region
          %264 = dma.done %s256, 1024
        $region44: #{tpu_custom_call.1} parent=31 // pred_fallthru
          _
        %s265 = sand.u32 %s42, 1
        %s266 = scalar_lea.sflag [#allocation10], %s265
        %s267 = sand.u32 %s42, 1
        %s268 = smul.addr %s267, 64
        %s269 = scalar_lea.vmem [#allocation9], %s268
        %p270 = pneg %p55
        %p271 = pneg %p52
        %s272 = sand.u32 %s20, 1
        %s273 = scalar_lea.sflag [#allocation12], %s272
        %s274 = sand.u32 %s70, 1
        %s275 = smul.addr %s274, 64
        %s276 = scalar_lea.vmem [#allocation11], %s275
        %p277 = pneg %p83
        %p278 = pneg %p80
        %s279 = sand.u32 %s20, 1
        %s280 = scalar_lea.sflag [#allocation12], %s279
        %s281 = sand.u32 %s98, 1
        %s282 = smul.addr %s281, 64
        %s283 = scalar_lea.vmem [#allocation13], %s282
        %p284 = pneg %p111
        %p285 = pneg %p108
        %p286 = pneg %p137
        %p287 = pneg %p134
        %p288 = scmp.lt.s32.totalorder %s24, 1
        %s289 = scalar_select %p288, %s24, 1
        %s290 = scalar_lea.vmem %s3, %s289
        %s291 = smul.u32 8, %s25
        %s292 = smul.u32 8, %s25
        %s293 = smul.u32 8, %s25
        %p294 = scmp.lt.s32.totalorder %s24, 1
        %s295 = scalar_select %p294, %s24, 1
        %s296 = scalar_lea.vmem %s3, %s295
        %p297 = scmp.eq.s32.totalorder %s25, 0
        // Predicated region
        $region45: #{tpu_custom_call.1} parent=31 // pred_check
          %p298 = pneg %p297
        $region46: #{tpu_custom_call.1} parent=31 // pred_check_branch
          %300 = sbr.rel (%p298) target = $region48
        $region47: #{tpu_custom_call.1} parent=31 // pred_region
          %301 = vst [vmem:[#allocation2] sm:$0xff] 0.0
          %302 = vst [vmem:[#allocation3] sm:$0x3] 0.0
          %303 = vst [vmem:[#allocation4] sm:$0x3] 0.0
          %304 = vst [vmem:[#allocation5] sm:$0x3] 0.0
          %305 = vst [vmem:[#allocation6] sm:$0x3] 0.0
          %306 = vst [vmem:[#allocation7] sm:$0x3] 0.0
          %307 = vst [vmem:[#allocation8] sm:$0x3] 0.0
        $region48: #{tpu_custom_call.1} parent=31 // pred_fallthru
          _
        %v308 = vlaneseq
        %v309 = vand.u32 %v308, 127
        %vm310 = vcmp.gt.s32.totalorder %v309, 0
        %vm311 = vcmp.lt.s32.totalorder %v309, 127
        %v312 = vld [vmem:[%s239] sm:$0xff]
        %v313 = vld [vmem:[%s239 + $0x8] sm:$0xff]
        %v314 = vld [vmem:[%s239 + $0x10] sm:$0xff]
        %v315 = vld [vmem:[%s239 + $0x18] sm:$0xff]
        %v316 = vld [vmem:[%s239 + $0x20] sm:$0xff]
        %v317 = vld [vmem:[%s239 + $0x28] sm:$0xff]
        %v318 = vld [vmem:[%s239 + $0x30] sm:$0xff]
        %v319 = vld [vmem:[%s239 + $0x38] sm:$0xff]
        %320 = vrot.lane.b32.xlu0 %v312, 1
        %v321 = vpop.permute.xlu0 %320
        %322 = vrot.lane.b32.xlu0 %v313, 1
        %v323 = vpop.permute.xlu0 %322
        %324 = vrot.lane.b32.xlu0 %v314, 1
        %v325 = vpop.permute.xlu0 %324
        %326 = vrot.lane.b32.xlu0 %v315, 1
        %v327 = vpop.permute.xlu0 %326
        %328 = vrot.lane.b32.xlu0 %v316, 1
        %v329 = vpop.permute.xlu0 %328
        %330 = vrot.lane.b32.xlu0 %v317, 1
        %v331 = vpop.permute.xlu0 %330
        %332 = vrot.lane.b32.xlu0 %v318, 1
        %v333 = vpop.permute.xlu0 %332
        %334 = vrot.lane.b32.xlu0 %v319, 1
        %v335 = vpop.permute.xlu0 %334
        %v336 = vsel %vm310, 1, 0
        %vm337 = vcmp.eq.s32.totalorder %v336, 1
        %v338 = vsel %vm337, %v321, 0.0
        %v339 = vsel %vm337, %v323, 0.0
        %v340 = vsel %vm337, %v325, 0.0
        %v341 = vsel %vm337, %v327, 0.0
        %v342 = vsel %vm337, %v329, 0.0
        %v343 = vsel %vm337, %v331, 0.0
        %v344 = vsel %vm337, %v333, 0.0
        %v345 = vsel %vm337, %v335, 0.0
        %346 = vrot.lane.b32.xlu0 %v312, 127
        %v347 = vpop.permute.xlu0 %346
        %348 = vrot.lane.b32.xlu0 %v313, 127
        %v349 = vpop.permute.xlu0 %348
        %350 = vrot.lane.b32.xlu0 %v314, 127
        %v351 = vpop.permute.xlu0 %350
        %352 = vrot.lane.b32.xlu0 %v315, 127
        %v353 = vpop.permute.xlu0 %352
        %354 = vrot.lane.b32.xlu0 %v316, 127
        %v355 = vpop.permute.xlu0 %354
        %356 = vrot.lane.b32.xlu0 %v317, 127
        %v357 = vpop.permute.xlu0 %356
        %358 = vrot.lane.b32.xlu0 %v318, 127
        %v359 = vpop.permute.xlu0 %358
        %360 = vrot.lane.b32.xlu0 %v319, 127
        %v361 = vpop.permute.xlu0 %360
        %v362 = vsel %vm311, 1, 0
        %vm363 = vcmp.eq.s32.totalorder %v362, 1
        %v364 = vsel %vm363, %v347, 0.0
        %v365 = vsel %vm363, %v349, 0.0
        %v366 = vsel %vm363, %v351, 0.0
        %v367 = vsel %vm363, %v353, 0.0
        %v368 = vsel %vm363, %v355, 0.0
        %v369 = vsel %vm363, %v357, 0.0
        %v370 = vsel %vm363, %v359, 0.0
        %v371 = vsel %vm363, %v361, 0.0
        %v372 = vmul.f32 %v312, 2.0
        %v373 = vmul.f32 %v313, 2.0
        %v374 = vmul.f32 %v314, 2.0
        %v375 = vmul.f32 %v315, 2.0
        %v376 = vmul.f32 %v316, 2.0
        %v377 = vmul.f32 %v317, 2.0
        %v378 = vmul.f32 %v318, 2.0
        %v379 = vmul.f32 %v319, 2.0
        %v380 = vadd.f32 %v338, %v372
        %v381 = vadd.f32 %v339, %v373
        %v382 = vadd.f32 %v340, %v374
        %v383 = vadd.f32 %v341, %v375
        %v384 = vadd.f32 %v342, %v376
        %v385 = vadd.f32 %v343, %v377
        %v386 = vadd.f32 %v344, %v378
        %v387 = vadd.f32 %v345, %v379
        %v388 = vadd.f32 %v380, %v364
        %v389 = vadd.f32 %v381, %v365
        %v390 = vadd.f32 %v382, %v366
        %v391 = vadd.f32 %v383, %v367
        %v392 = vadd.f32 %v384, %v368
        %v393 = vadd.f32 %v385, %v369
        %v394 = vadd.f32 %v386, %v370
        %v395 = vadd.f32 %v387, %v371
        %v396 = vsub.f32 %v364, %v338
        %v397 = vsub.f32 %v365, %v339
        %v398 = vsub.f32 %v366, %v340
        %v399 = vsub.f32 %v367, %v341
        %v400 = vsub.f32 %v368, %v342
        %v401 = vsub.f32 %v369, %v343
        %v402 = vsub.f32 %v370, %v344
        %v403 = vsub.f32 %v371, %v345
        %v404 = vrot.slane %v396, 7
        %v405 = vrot.slane %v397, 7
        %v406 = vrot.slane %v398, 7
        %v407 = vrot.slane %v399, 7
        %v408 = vrot.slane %v400, 7
        %v409 = vrot.slane %v401, 7
        %v410 = vrot.slane %v402, 7
        %v411 = vrot.slane %v403, 7
        %v412 = vlaneseq
        %v413 = vshrl.u32 %v412, 7
        %vm414 = vcmp.lt.s32.totalorder %v413, 1
        %v415 = vsel %vm414, %v410, %v411
        %v416 = vsel %vm414, %v409, %v410
        %v417 = vsel %vm414, %v408, %v409
        %v418 = vsel %vm414, %v407, %v408
        %v419 = vsel %vm414, %v406, %v407
        %v420 = vsel %vm414, %v405, %v406
        %v421 = vsel %vm414, %v404, %v405
        %v422 = vsel %vm414, %v411, %v404
        %v423 = vrot.slane %v396, 6
        %v424 = vrot.slane %v397, 6
        %v425 = vrot.slane %v398, 6
        %v426 = vrot.slane %v399, 6
        %v427 = vrot.slane %v400, 6
        %v428 = vrot.slane %v401, 6
        %v429 = vrot.slane %v402, 6
        %v430 = vrot.slane %v403, 6
        %vm431 = vcmp.lt.s32.totalorder %v413, 2
        %v432 = vsel %vm431, %v429, %v430
        %v433 = vsel %vm431, %v428, %v429
        %v434 = vsel %vm431, %v427, %v428
        %v435 = vsel %vm431, %v426, %v427
        %v436 = vsel %vm431, %v425, %v426
        %v437 = vsel %vm431, %v424, %v425
        %v438 = vsel %vm431, %v423, %v424
        %v439 = vsel %vm431, %v430, %v423
        %v440 = vrot.slane %v388, 6
        %v441 = vrot.slane %v389, 6
        %v442 = vrot.slane %v390, 6
        %v443 = vrot.slane %v391, 6
        %v444 = vrot.slane %v392, 6
        %v445 = vrot.slane %v393, 6
        %v446 = vrot.slane %v394, 6
        %v447 = vrot.slane %v395, 6
        %v448 = vsel %vm431, %v446, %v447
        %v449 = vsel %vm431, %v445, %v446
        %v450 = vsel %vm431, %v444, %v445
        %v451 = vsel %vm431, %v443, %v444
        %v452 = vsel %vm431, %v442, %v443
        %v453 = vsel %vm431, %v441, %v442
        %v454 = vsel %vm431, %v440, %v441
        %v455 = vsel %vm431, %v447, %v440
        %v456 = vmul.f32 %v422, 2.0
        %v457 = vmul.f32 %v421, 2.0
        %v458 = vmul.f32 %v420, 2.0
        %v459 = vmul.f32 %v419, 2.0
        %v460 = vmul.f32 %v418, 2.0
        %v461 = vmul.f32 %v417, 2.0
        %v462 = vmul.f32 %v416, 2.0
        %v463 = vmul.f32 %v415, 2.0
        %v464 = vadd.f32 %v439, %v456
        %v465 = vadd.f32 %v438, %v457
        %v466 = vadd.f32 %v437, %v458
        %v467 = vadd.f32 %v436, %v459
        %v468 = vadd.f32 %v435, %v460
        %v469 = vadd.f32 %v434, %v461
        %v470 = vadd.f32 %v433, %v462
        %v471 = vadd.f32 %v432, %v463
        %v472 = vadd.f32 %v464, %v396
        %v473 = vadd.f32 %v465, %v397
        %v474 = vadd.f32 %v466, %v398
        %v475 = vadd.f32 %v467, %v399
        %v476 = vadd.f32 %v468, %v400
        %v477 = vadd.f32 %v469, %v401
        %v478 = vadd.f32 %v470, %v402
        %v479 = vadd.f32 %v471, %v403
        %v480 = vand.u32 2147483647, %v472
        %v481 = vand.u32 2147483647, %v473
        %v482 = vand.u32 2147483647, %v474
        %v483 = vand.u32 2147483647, %v475
        %v484 = vand.u32 2147483647, %v476
        %v485 = vand.u32 2147483647, %v477
        %v486 = vand.u32 2147483647, %v478
        %v487 = vand.u32 2147483647, %v479
        %v488 = vsub.f32 %v455, %v388
        %v489 = vsub.f32 %v454, %v389
        %v490 = vsub.f32 %v453, %v390
        %v491 = vsub.f32 %v452, %v391
        %v492 = vsub.f32 %v451, %v392
        %v493 = vsub.f32 %v450, %v393
        %v494 = vsub.f32 %v449, %v394
        %v495 = vsub.f32 %v448, %v395
        %v496 = vand.u32 2147483647, %v488
        %v497 = vand.u32 2147483647, %v489
        %v498 = vand.u32 2147483647, %v490
        %v499 = vand.u32 2147483647, %v491
        %v500 = vand.u32 2147483647, %v492
        %v501 = vand.u32 2147483647, %v493
        %v502 = vand.u32 2147483647, %v494
        %v503 = vand.u32 2147483647, %v495
        %v504 = vadd.f32 %v480, %v496
        %v505 = vadd.f32 %v481, %v497
        %v506 = vadd.f32 %v482, %v498
        %v507 = vadd.f32 %v483, %v499
        %v508 = vadd.f32 %v484, %v500
        %v509 = vadd.f32 %v485, %v501
        %v510 = vadd.f32 %v486, %v502
        %v511 = vadd.f32 %v487, %v503
        %v512 = vld [vmem:[#allocation3] sm:$0x3]
        %v513 = vld [vmem:[#allocation4] sm:$0x3]
        %v515 = vrot.slane %v513, 1
        %v518 = vrot.slane %v396, 7
        %vm520 = vcmask 1040384
        %v521 = vsel %vm520, %v515, %v518
        %v522 = vmul.f32 %v521, 2.0
        %v523 = vadd.f32 %v513, %v522
        %v524 = vadd.f32 %v523, %v396
        %v525 = vand.u32 2147483647, %v524
        %v526 = vsub.f32 %v512, %v388
        %v527 = vand.u32 2147483647, %v526
        %v528 = vadd.f32 %v525, %v527
        %529 = vst [vmem:[#allocation3 - $0x6] sm:$0xc0] %v395
        %530 = vst [vmem:[#allocation4 - $0x6] sm:$0xc0] %v403
        %v531 = vld [vmem:[%s249] sm:$0xff]
        %v532 = vld [vmem:[%s249 + $0x8] sm:$0xff]
        %v533 = vld [vmem:[%s249 + $0x10] sm:$0xff]
        %v534 = vld [vmem:[%s249 + $0x18] sm:$0xff]
        %v535 = vld [vmem:[%s249 + $0x20] sm:$0xff]
        %v536 = vld [vmem:[%s249 + $0x28] sm:$0xff]
        %v537 = vld [vmem:[%s249 + $0x30] sm:$0xff]
        %v538 = vld [vmem:[%s249 + $0x38] sm:$0xff]
        %539 = vrot.lane.b32.xlu0 %v531, 1
        %v540 = vpop.permute.xlu0 %539
        %541 = vrot.lane.b32.xlu0 %v532, 1
        %v542 = vpop.permute.xlu0 %541
        %543 = vrot.lane.b32.xlu0 %v533, 1
        %v544 = vpop.permute.xlu0 %543
        %545 = vrot.lane.b32.xlu0 %v534, 1
        %v546 = vpop.permute.xlu0 %545
        %547 = vrot.lane.b32.xlu0 %v535, 1
        %v548 = vpop.permute.xlu0 %547
        %549 = vrot.lane.b32.xlu0 %v536, 1
        %v550 = vpop.permute.xlu0 %549
        %551 = vrot.lane.b32.xlu0 %v537, 1
        %v552 = vpop.permute.xlu0 %551
        %553 = vrot.lane.b32.xlu0 %v538, 1
        %v554 = vpop.permute.xlu0 %553
        %v555 = vsel %vm337, %v540, 0.0
        %v556 = vsel %vm337, %v542, 0.0
        %v557 = vsel %vm337, %v544, 0.0
        %v558 = vsel %vm337, %v546, 0.0
        %v559 = vsel %vm337, %v548, 0.0
        %v560 = vsel %vm337, %v550, 0.0
        %v561 = vsel %vm337, %v552, 0.0
        %v562 = vsel %vm337, %v554, 0.0
        %563 = vrot.lane.b32.xlu0 %v531, 127
        %v564 = vpop.permute.xlu0 %563
        %565 = vrot.lane.b32.xlu0 %v532, 127
        %v566 = vpop.permute.xlu0 %565
        %567 = vrot.lane.b32.xlu0 %v533, 127
        %v568 = vpop.permute.xlu0 %567
        %569 = vrot.lane.b32.xlu0 %v534, 127
        %v570 = vpop.permute.xlu0 %569
        %571 = vrot.lane.b32.xlu0 %v535, 127
        %v572 = vpop.permute.xlu0 %571
        %573 = vrot.lane.b32.xlu0 %v536, 127
        %v574 = vpop.permute.xlu0 %573
        %575 = vrot.lane.b32.xlu0 %v537, 127
        %v576 = vpop.permute.xlu0 %575
        %577 = vrot.lane.b32.xlu0 %v538, 127
        %v578 = vpop.permute.xlu0 %577
        %v579 = vsel %vm363, %v564, 0.0
        %v580 = vsel %vm363, %v566, 0.0
        %v581 = vsel %vm363, %v568, 0.0
        %v582 = vsel %vm363, %v570, 0.0
        %v583 = vsel %vm363, %v572, 0.0
        %v584 = vsel %vm363, %v574, 0.0
        %v585 = vsel %vm363, %v576, 0.0
        %v586 = vsel %vm363, %v578, 0.0
        %v587 = vmul.f32 %v531, 2.0
        %v588 = vmul.f32 %v532, 2.0
        %v589 = vmul.f32 %v533, 2.0
        %v590 = vmul.f32 %v534, 2.0
        %v591 = vmul.f32 %v535, 2.0
        %v592 = vmul.f32 %v536, 2.0
        %v593 = vmul.f32 %v537, 2.0
        %v594 = vmul.f32 %v538, 2.0
        %v595 = vadd.f32 %v555, %v587
        %v596 = vadd.f32 %v556, %v588
        %v597 = vadd.f32 %v557, %v589
        %v598 = vadd.f32 %v558, %v590
        %v599 = vadd.f32 %v559, %v591
        %v600 = vadd.f32 %v560, %v592
        %v601 = vadd.f32 %v561, %v593
        %v602 = vadd.f32 %v562, %v594
        %v603 = vadd.f32 %v595, %v579
        %v604 = vadd.f32 %v596, %v580
        %v605 = vadd.f32 %v597, %v581
        %v606 = vadd.f32 %v598, %v582
        %v607 = vadd.f32 %v599, %v583
        %v608 = vadd.f32 %v600, %v584
        %v609 = vadd.f32 %v601, %v585
        %v610 = vadd.f32 %v602, %v586
        %v611 = vsub.f32 %v579, %v555
        %v612 = vsub.f32 %v580, %v556
        %v613 = vsub.f32 %v581, %v557
        %v614 = vsub.f32 %v582, %v558
        %v615 = vsub.f32 %v583, %v559
        %v616 = vsub.f32 %v584, %v560
        %v617 = vsub.f32 %v585, %v561
        %v618 = vsub.f32 %v586, %v562
        %v619 = vrot.slane %v611, 7
        %v620 = vrot.slane %v612, 7
        %v621 = vrot.slane %v613, 7
        %v622 = vrot.slane %v614, 7
        %v623 = vrot.slane %v615, 7
        %v624 = vrot.slane %v616, 7
        %v625 = vrot.slane %v617, 7
        %v626 = vrot.slane %v618, 7
        %v627 = vsel %vm414, %v625, %v626
        %v628 = vsel %vm414, %v624, %v625
        %v629 = vsel %vm414, %v623, %v624
        %v630 = vsel %vm414, %v622, %v623
        %v631 = vsel %vm414, %v621, %v622
        %v632 = vsel %vm414, %v620, %v621
        %v633 = vsel %vm414, %v619, %v620
        %v634 = vsel %vm414, %v626, %v619
        %v635 = vrot.slane %v611, 6
        %v636 = vrot.slane %v612, 6
        %v637 = vrot.slane %v613, 6
        %v638 = vrot.slane %v614, 6
        %v639 = vrot.slane %v615, 6
        %v640 = vrot.slane %v616, 6
        %v641 = vrot.slane %v617, 6
        %v642 = vrot.slane %v618, 6
        %v643 = vsel %vm431, %v641, %v642
        %v644 = vsel %vm431, %v640, %v641
        %v645 = vsel %vm431, %v639, %v640
        %v646 = vsel %vm431, %v638, %v639
        %v647 = vsel %vm431, %v637, %v638
        %v648 = vsel %vm431, %v636, %v637
        %v649 = vsel %vm431, %v635, %v636
        %v650 = vsel %vm431, %v642, %v635
        %v651 = vrot.slane %v603, 6
        %v652 = vrot.slane %v604, 6
        %v653 = vrot.slane %v605, 6
        %v654 = vrot.slane %v606, 6
        %v655 = vrot.slane %v607, 6
        %v656 = vrot.slane %v608, 6
        %v657 = vrot.slane %v609, 6
        %v658 = vrot.slane %v610, 6
        %v659 = vsel %vm431, %v657, %v658
        %v660 = vsel %vm431, %v656, %v657
        %v661 = vsel %vm431, %v655, %v656
        %v662 = vsel %vm431, %v654, %v655
        %v663 = vsel %vm431, %v653, %v654
        %v664 = vsel %vm431, %v652, %v653
        %v665 = vsel %vm431, %v651, %v652
        %v666 = vsel %vm431, %v658, %v651
        %v667 = vmul.f32 %v634, 2.0
        %v668 = vmul.f32 %v633, 2.0
        %v669 = vmul.f32 %v632, 2.0
        %v670 = vmul.f32 %v631, 2.0
        %v671 = vmul.f32 %v630, 2.0
        %v672 = vmul.f32 %v629, 2.0
        %v673 = vmul.f32 %v628, 2.0
        %v674 = vmul.f32 %v627, 2.0
        %v675 = vadd.f32 %v650, %v667
        %v676 = vadd.f32 %v649, %v668
        %v677 = vadd.f32 %v648, %v669
        %v678 = vadd.f32 %v647, %v670
        %v679 = vadd.f32 %v646, %v671
        %v680 = vadd.f32 %v645, %v672
        %v681 = vadd.f32 %v644, %v673
        %v682 = vadd.f32 %v643, %v674
        %v683 = vadd.f32 %v675, %v611
        %v684 = vadd.f32 %v676, %v612
        %v685 = vadd.f32 %v677, %v613
        %v686 = vadd.f32 %v678, %v614
        %v687 = vadd.f32 %v679, %v615
        %v688 = vadd.f32 %v680, %v616
        %v689 = vadd.f32 %v681, %v617
        %v690 = vadd.f32 %v682, %v618
        %v691 = vand.u32 2147483647, %v683
        %v692 = vand.u32 2147483647, %v684
        %v693 = vand.u32 2147483647, %v685
        %v694 = vand.u32 2147483647, %v686
        %v695 = vand.u32 2147483647, %v687
        %v696 = vand.u32 2147483647, %v688
        %v697 = vand.u32 2147483647, %v689
        %v698 = vand.u32 2147483647, %v690
        %v699 = vsub.f32 %v666, %v603
        %v700 = vsub.f32 %v665, %v604
        %v701 = vsub.f32 %v664, %v605
        %v702 = vsub.f32 %v663, %v606
        %v703 = vsub.f32 %v662, %v607
        %v704 = vsub.f32 %v661, %v608
        %v705 = vsub.f32 %v660, %v609
        %v706 = vsub.f32 %v659, %v610
        %v707 = vand.u32 2147483647, %v699
        %v708 = vand.u32 2147483647, %v700
        %v709 = vand.u32 2147483647, %v701
        %v710 = vand.u32 2147483647, %v702
        %v711 = vand.u32 2147483647, %v703
        %v712 = vand.u32 2147483647, %v704
        %v713 = vand.u32 2147483647, %v705
        %v714 = vand.u32 2147483647, %v706
        %v715 = vadd.f32 %v691, %v707
        %v716 = vadd.f32 %v692, %v708
        %v717 = vadd.f32 %v693, %v709
        %v718 = vadd.f32 %v694, %v710
        %v719 = vadd.f32 %v695, %v711
        %v720 = vadd.f32 %v696, %v712
        %v721 = vadd.f32 %v697, %v713
        %v722 = vadd.f32 %v698, %v714
        %v723 = vld [vmem:[#allocation5] sm:$0x3]
        %v724 = vld [vmem:[#allocation6] sm:$0x3]
        %v726 = vrot.slane %v724, 1
        %v729 = vrot.slane %v611, 7
        %v731 = vsel %vm520, %v726, %v729
        %v732 = vmul.f32 %v731, 2.0
        %v733 = vadd.f32 %v724, %v732
        %v734 = vadd.f32 %v733, %v611
        %v735 = vand.u32 2147483647, %v734
        %v736 = vsub.f32 %v723, %v603
        %v737 = vand.u32 2147483647, %v736
        %v738 = vadd.f32 %v735, %v737
        %739 = vst [vmem:[#allocation5 - $0x6] sm:$0xc0] %v610
        %740 = vst [vmem:[#allocation6 - $0x6] sm:$0xc0] %v618
        %v741 = vld [vmem:[%s259] sm:$0xff]
        %v742 = vld [vmem:[%s259 + $0x8] sm:$0xff]
        %v743 = vld [vmem:[%s259 + $0x10] sm:$0xff]
        %v744 = vld [vmem:[%s259 + $0x18] sm:$0xff]
        %v745 = vld [vmem:[%s259 + $0x20] sm:$0xff]
        %v746 = vld [vmem:[%s259 + $0x28] sm:$0xff]
        %v747 = vld [vmem:[%s259 + $0x30] sm:$0xff]
        %v748 = vld [vmem:[%s259 + $0x38] sm:$0xff]
        %749 = vrot.lane.b32.xlu0 %v741, 1
        %v750 = vpop.permute.xlu0 %749
        %751 = vrot.lane.b32.xlu0 %v742, 1
        %v752 = vpop.permute.xlu0 %751
        %753 = vrot.lane.b32.xlu0 %v743, 1
        %v754 = vpop.permute.xlu0 %753
        %755 = vrot.lane.b32.xlu0 %v744, 1
        %v756 = vpop.permute.xlu0 %755
        %757 = vrot.lane.b32.xlu0 %v745, 1
        %v758 = vpop.permute.xlu0 %757
        %759 = vrot.lane.b32.xlu0 %v746, 1
        %v760 = vpop.permute.xlu0 %759
        %761 = vrot.lane.b32.xlu0 %v747, 1
        %v762 = vpop.permute.xlu0 %761
        %763 = vrot.lane.b32.xlu0 %v748, 1
        %v764 = vpop.permute.xlu0 %763
        %v765 = vsel %vm337, %v750, 0.0
        %v766 = vsel %vm337, %v752, 0.0
        %v767 = vsel %vm337, %v754, 0.0
        %v768 = vsel %vm337, %v756, 0.0
        %v769 = vsel %vm337, %v758, 0.0
        %v770 = vsel %vm337, %v760, 0.0
        %v771 = vsel %vm337, %v762, 0.0
        %v772 = vsel %vm337, %v764, 0.0
        %773 = vrot.lane.b32.xlu0 %v741, 127
        %v774 = vpop.permute.xlu0 %773
        %775 = vrot.lane.b32.xlu0 %v742, 127
        %v776 = vpop.permute.xlu0 %775
        %777 = vrot.lane.b32.xlu0 %v743, 127
        %v778 = vpop.permute.xlu0 %777
        %779 = vrot.lane.b32.xlu0 %v744, 127
        %v780 = vpop.permute.xlu0 %779
        %781 = vrot.lane.b32.xlu0 %v745, 127
        %v782 = vpop.permute.xlu0 %781
        %783 = vrot.lane.b32.xlu0 %v746, 127
        %v784 = vpop.permute.xlu0 %783
        %785 = vrot.lane.b32.xlu0 %v747, 127
        %v786 = vpop.permute.xlu0 %785
        %787 = vrot.lane.b32.xlu0 %v748, 127
        %v788 = vpop.permute.xlu0 %787
        %v789 = vsel %vm363, %v774, 0.0
        %v790 = vsel %vm363, %v776, 0.0
        %v791 = vsel %vm363, %v778, 0.0
        %v792 = vsel %vm363, %v780, 0.0
        %v793 = vsel %vm363, %v782, 0.0
        %v794 = vsel %vm363, %v784, 0.0
        %v795 = vsel %vm363, %v786, 0.0
        %v796 = vsel %vm363, %v788, 0.0
        %v797 = vmul.f32 %v741, 2.0
        %v798 = vmul.f32 %v742, 2.0
        %v799 = vmul.f32 %v743, 2.0
        %v800 = vmul.f32 %v744, 2.0
        %v801 = vmul.f32 %v745, 2.0
        %v802 = vmul.f32 %v746, 2.0
        %v803 = vmul.f32 %v747, 2.0
        %v804 = vmul.f32 %v748, 2.0
        %v805 = vadd.f32 %v765, %v797
        %v806 = vadd.f32 %v766, %v798
        %v807 = vadd.f32 %v767, %v799
        %v808 = vadd.f32 %v768, %v800
        %v809 = vadd.f32 %v769, %v801
        %v810 = vadd.f32 %v770, %v802
        %v811 = vadd.f32 %v771, %v803
        %v812 = vadd.f32 %v772, %v804
        %v813 = vadd.f32 %v805, %v789
        %v814 = vadd.f32 %v806, %v790
        %v815 = vadd.f32 %v807, %v791
        %v816 = vadd.f32 %v808, %v792
        %v817 = vadd.f32 %v809, %v793
        %v818 = vadd.f32 %v810, %v794
        %v819 = vadd.f32 %v811, %v795
        %v820 = vadd.f32 %v812, %v796
        %v821 = vsub.f32 %v789, %v765
        %v822 = vsub.f32 %v790, %v766
        %v823 = vsub.f32 %v791, %v767
        %v824 = vsub.f32 %v792, %v768
        %v825 = vsub.f32 %v793, %v769
        %v826 = vsub.f32 %v794, %v770
        %v827 = vsub.f32 %v795, %v771
        %v828 = vsub.f32 %v796, %v772
        %v829 = vrot.slane %v821, 7
        %v830 = vrot.slane %v822, 7
        %v831 = vrot.slane %v823, 7
        %v832 = vrot.slane %v824, 7
        %v833 = vrot.slane %v825, 7
        %v834 = vrot.slane %v826, 7
        %v835 = vrot.slane %v827, 7
        %v836 = vrot.slane %v828, 7
        %v837 = vsel %vm414, %v835, %v836
        %v838 = vsel %vm414, %v834, %v835
        %v839 = vsel %vm414, %v833, %v834
        %v840 = vsel %vm414, %v832, %v833
        %v841 = vsel %vm414, %v831, %v832
        %v842 = vsel %vm414, %v830, %v831
        %v843 = vsel %vm414, %v829, %v830
        %v844 = vsel %vm414, %v836, %v829
        %v845 = vrot.slane %v821, 6
        %v846 = vrot.slane %v822, 6
        %v847 = vrot.slane %v823, 6
        %v848 = vrot.slane %v824, 6
        %v849 = vrot.slane %v825, 6
        %v850 = vrot.slane %v826, 6
        %v851 = vrot.slane %v827, 6
        %v852 = vrot.slane %v828, 6
        %v853 = vsel %vm431, %v851, %v852
        %v854 = vsel %vm431, %v850, %v851
        %v855 = vsel %vm431, %v849, %v850
        %v856 = vsel %vm431, %v848, %v849
        %v857 = vsel %vm431, %v847, %v848
        %v858 = vsel %vm431, %v846, %v847
        %v859 = vsel %vm431, %v845, %v846
        %v860 = vsel %vm431, %v852, %v845
        %v861 = vrot.slane %v813, 6
        %v862 = vrot.slane %v814, 6
        %v863 = vrot.slane %v815, 6
        %v864 = vrot.slane %v816, 6
        %v865 = vrot.slane %v817, 6
        %v866 = vrot.slane %v818, 6
        %v867 = vrot.slane %v819, 6
        %v868 = vrot.slane %v820, 6
        %v869 = vsel %vm431, %v867, %v868
        %v870 = vsel %vm431, %v866, %v867
        %v871 = vsel %vm431, %v865, %v866
        %v872 = vsel %vm431, %v864, %v865
        %v873 = vsel %vm431, %v863, %v864
        %v874 = vsel %vm431, %v862, %v863
        %v875 = vsel %vm431, %v861, %v862
        %v876 = vsel %vm431, %v868, %v861
        %v877 = vmul.f32 %v844, 2.0
        %v878 = vmul.f32 %v843, 2.0
        %v879 = vmul.f32 %v842, 2.0
        %v880 = vmul.f32 %v841, 2.0
        %v881 = vmul.f32 %v840, 2.0
        %v882 = vmul.f32 %v839, 2.0
        %v883 = vmul.f32 %v838, 2.0
        %v884 = vmul.f32 %v837, 2.0
        %v885 = vadd.f32 %v860, %v877
        %v886 = vadd.f32 %v859, %v878
        %v887 = vadd.f32 %v858, %v879
        %v888 = vadd.f32 %v857, %v880
        %v889 = vadd.f32 %v856, %v881
        %v890 = vadd.f32 %v855, %v882
        %v891 = vadd.f32 %v854, %v883
        %v892 = vadd.f32 %v853, %v884
        %v893 = vadd.f32 %v885, %v821
        %v894 = vadd.f32 %v886, %v822
        %v895 = vadd.f32 %v887, %v823
        %v896 = vadd.f32 %v888, %v824
        %v897 = vadd.f32 %v889, %v825
        %v898 = vadd.f32 %v890, %v826
        %v899 = vadd.f32 %v891, %v827
        %v900 = vadd.f32 %v892, %v828
        %v901 = vand.u32 2147483647, %v893
        %v902 = vand.u32 2147483647, %v894
        %v903 = vand.u32 2147483647, %v895
        %v904 = vand.u32 2147483647, %v896
        %v905 = vand.u32 2147483647, %v897
        %v906 = vand.u32 2147483647, %v898
        %v907 = vand.u32 2147483647, %v899
        %v908 = vand.u32 2147483647, %v900
        %v909 = vsub.f32 %v876, %v813
        %v910 = vsub.f32 %v875, %v814
        %v911 = vsub.f32 %v874, %v815
        %v912 = vsub.f32 %v873, %v816
        %v913 = vsub.f32 %v872, %v817
        %v914 = vsub.f32 %v871, %v818
        %v915 = vsub.f32 %v870, %v819
        %v916 = vsub.f32 %v869, %v820
        %v917 = vand.u32 2147483647, %v909
        %v918 = vand.u32 2147483647, %v910
        %v919 = vand.u32 2147483647, %v911
        %v920 = vand.u32 2147483647, %v912
        %v921 = vand.u32 2147483647, %v913
        %v922 = vand.u32 2147483647, %v914
        %v923 = vand.u32 2147483647, %v915
        %v924 = vand.u32 2147483647, %v916
        %v925 = vadd.f32 %v901, %v917
        %v926 = vadd.f32 %v902, %v918
        %v927 = vadd.f32 %v903, %v919
        %v928 = vadd.f32 %v904, %v920
        %v929 = vadd.f32 %v905, %v921
        %v930 = vadd.f32 %v906, %v922
        %v931 = vadd.f32 %v907, %v923
        %v932 = vadd.f32 %v908, %v924
        %v933 = vld [vmem:[#allocation7] sm:$0x3]
        %v934 = vld [vmem:[#allocation8] sm:$0x3]
        %v936 = vrot.slane %v934, 1
        %v939 = vrot.slane %v821, 7
        %v941 = vsel %vm520, %v936, %v939
        %v942 = vmul.f32 %v941, 2.0
        %v943 = vadd.f32 %v934, %v942
        %v944 = vadd.f32 %v943, %v821
        %v945 = vand.u32 2147483647, %v944
        %v946 = vsub.f32 %v933, %v813
        %v947 = vand.u32 2147483647, %v946
        %v948 = vadd.f32 %v945, %v947
        %949 = vst [vmem:[#allocation7 - $0x6] sm:$0xc0] %v820
        %950 = vst [vmem:[#allocation8 - $0x6] sm:$0xc0] %v828
        %v951 = vmax.f32 %v504, %v715
        %v952 = vmax.f32 %v505, %v716
        %v953 = vmax.f32 %v506, %v717
        %v954 = vmax.f32 %v507, %v718
        %v955 = vmax.f32 %v508, %v719
        %v956 = vmax.f32 %v509, %v720
        %v957 = vmax.f32 %v510, %v721
        %v958 = vmax.f32 %v511, %v722
        %v959 = vsub.f32 %v951, %v925
        %v960 = vsub.f32 %v952, %v926
        %v961 = vsub.f32 %v953, %v927
        %v962 = vsub.f32 %v954, %v928
        %v963 = vsub.f32 %v955, %v929
        %v964 = vsub.f32 %v956, %v930
        %v965 = vsub.f32 %v957, %v931
        %v966 = vsub.f32 %v958, %v932
        %v967 = vand.u32 2147483647, %v959
        %v968 = vand.u32 2147483647, %v960
        %v969 = vand.u32 2147483647, %v961
        %v970 = vand.u32 2147483647, %v962
        %v971 = vand.u32 2147483647, %v963
        %v972 = vand.u32 2147483647, %v964
        %v973 = vand.u32 2147483647, %v965
        %v974 = vand.u32 2147483647, %v966
        %v975 = vadd.s32 %v413, 8
        %v976 = vadd.s32 %v413, 16
        %v977 = vadd.s32 %v413, 24
        %v978 = vadd.s32 %v413, 32
        %v979 = vadd.s32 %v413, 40
        %v980 = vadd.s32 %v413, 48
        %v981 = vadd.s32 %v413, 56
        %vm982 = vcmp.ge.s32.totalorder %v413, 2
        %vm983 = vcmp.ge.s32.totalorder %v975, 2
        %vm984 = vcmp.ge.s32.totalorder %v976, 2
        %vm985 = vcmp.ge.s32.totalorder %v977, 2
        %vm986 = vcmp.ge.s32.totalorder %v978, 2
        %vm987 = vcmp.ge.s32.totalorder %v979, 2
        %vm988 = vcmp.ge.s32.totalorder %v980, 2
        %vm989 = vcmp.ge.s32.totalorder %v981, 2
        %v990 = vsel %vm982, 1, 0
        %v991 = vsel %vm983, 1, 0
        %v992 = vsel %vm984, 1, 0
        %v993 = vsel %vm985, 1, 0
        %v994 = vsel %vm986, 1, 0
        %v995 = vsel %vm987, 1, 0
        %v996 = vsel %vm988, 1, 0
        %v997 = vsel %vm989, 1, 0
        %vm998 = vcmp.eq.s32.totalorder %v990, 1
        %vm999 = vcmp.eq.s32.totalorder %v991, 1
        %vm1000 = vcmp.eq.s32.totalorder %v992, 1
        %vm1001 = vcmp.eq.s32.totalorder %v993, 1
        %vm1002 = vcmp.eq.s32.totalorder %v994, 1
        %vm1003 = vcmp.eq.s32.totalorder %v995, 1
        %vm1004 = vcmp.eq.s32.totalorder %v996, 1
        %vm1005 = vcmp.eq.s32.totalorder %v997, 1
        %v1006 = vsel %vm998, %v967, 0.0
        %v1007 = vsel %vm999, %v968, 0.0
        %v1008 = vsel %vm1000, %v969, 0.0
        %v1009 = vsel %vm1001, %v970, 0.0
        %v1010 = vsel %vm1002, %v971, 0.0
        %v1011 = vsel %vm1003, %v972, 0.0
        %v1012 = vsel %vm1004, %v973, 0.0
        %v1013 = vsel %vm1005, %v974, 0.0
        %v1014 = vld [vmem:[#allocation2] sm:$0xff]
        %v1015 = vadd.f32 %v1006, %v1007
        %v1016 = vadd.f32 %v1015, %v1008
        %v1017 = vadd.f32 %v1016, %v1009
        %v1018 = vadd.f32 %v1017, %v1010
        %v1019 = vadd.f32 %v1018, %v1011
        %v1020 = vadd.f32 %v1019, %v1012
        %v1021 = vadd.f32 %v1020, %v1013
        %v1022 = vadd.f32 %v1014, %v1021
        %1023 = vst [vmem:[#allocation2] sm:$0xff] %v1022
        %v1024 = vmax.f32 %v528, %v738
        %v1025 = vsub.f32 %v1024, %v948
        %v1026 = vand.u32 2147483647, %v1025
        %vm1027 = vcmp.ge.s32.totalorder %v413, 1
        %p1028 = scmp.gt.s32.totalorder %s25, 0
        %s1029 = scalar_select %p1028, 1, 0
        %v1030 = vstv %s1029
        %vm1031 = vcmp.eq.s32.totalorder %v1030, 1
        %vm1032 = vmor %vm1027, %vm1031
        %v1033 = vsel %vm1032, 1, 0
        %vm1034 = vcmp.eq.s32.totalorder %v1033, 1
        %v1035 = vsel %vm1034, %v1026, 0.0
        %v1036 = vld [vmem:[#allocation2] sm:$0x3]
        %v1037 = vadd.f32 %v1036, %v1035
        %1038 = vst [vmem:[#allocation2] sm:$0x3] %v1037
        // Predicated region
        $region49: #{tpu_custom_call.1} parent=31 // pred_check
          %p1039 = pneg %p297
        $region50: #{tpu_custom_call.1} parent=31 // pred_check_branch
          %1041 = sbr.rel (%p1039) target = $region52
        $region51: #{tpu_custom_call.1} parent=31 // pred_region
          %v1042 = vld [vmem:[#allocation4] sm:$0x1]
          %v1043 = vld [vmem:[#allocation4 + $0x1] sm:$0x1]
          %v1044 = vmul.f32 %v1043, 2.0
          %v1045 = vadd.f32 %v1042, %v1044
          %v1046 = vld [vmem:[#allocation3] sm:$0x1]
          %v1047 = vand.u32 2147483647, %v1045
          %v1048 = vand.u32 2147483647, %v1046
          %v1049 = vadd.f32 %v1047, %v1048
          %v1050 = vld [vmem:[#allocation6] sm:$0x1]
          %v1051 = vld [vmem:[#allocation6 + $0x1] sm:$0x1]
          %v1052 = vmul.f32 %v1051, 2.0
          %v1053 = vadd.f32 %v1050, %v1052
          %v1054 = vld [vmem:[#allocation5] sm:$0x1]
          %v1055 = vand.u32 2147483647, %v1053
          %v1056 = vand.u32 2147483647, %v1054
          %v1057 = vadd.f32 %v1055, %v1056
          %v1058 = vmax.f32 %v1049, %v1057
          %v1059 = vld [vmem:[#allocation8] sm:$0x1]
          %v1060 = vld [vmem:[#allocation8 + $0x1] sm:$0x1]
          %v1061 = vmul.f32 %v1060, 2.0
          %v1062 = vadd.f32 %v1059, %v1061
          %v1063 = vld [vmem:[#allocation7] sm:$0x1]
          %v1064 = vand.u32 2147483647, %v1062
          %v1065 = vand.u32 2147483647, %v1063
          %v1066 = vadd.f32 %v1064, %v1065
          %v1067 = vsub.f32 %v1058, %v1066
          %v1068 = vand.u32 2147483647, %v1067
          %v1069 = vsel %vm520, %v1068, 0.0
          %1070 = vadd.xlane.f32.xlu0 %v1069
          %v1071 = vpop.xlane.xlu0 %1070
          %v1072 = vrot.slane %v1071, 4
          %v1073 = vadd.f32 %v1071, %v1072
          %v1074 = vrot.slane %v1073, 2
          %v1075 = vadd.f32 %v1073, %v1074
          %v1076 = vrot.slane %v1075, 1
          %v1077 = vadd.f32 %v1075, %v1076
          %s1078 = vtos %v1077
          %v1079 = vld [vmem:[#allocation2] sm:$0xff]
          %1080 = vadd.xlane.f32.xlu0 %v1079
          %v1081 = vpop.xlane.xlu0 %1080
          %v1082 = vrot.slane %v1081, 4
          %v1083 = vadd.f32 %v1081, %v1082
          %v1084 = vrot.slane %v1083, 2
          %v1085 = vadd.f32 %v1083, %v1084
          %v1086 = vrot.slane %v1085, 1
          %v1087 = vadd.f32 %v1085, %v1086
          %s1088 = vtos %v1087
          %s1089 = sadd.f32 %s1088, %s1078
          %s1090 = smul.f32 %s1089, 0.00012207031
          %v1091 = vstv %s1090
          %vm1092 = vcmask 0
          %1093 = vst.msk [vmem:[%s296] sm:$0x1] %vm1092, %v1091
        $region52: #{tpu_custom_call.1} parent=31 // pred_fallthru
          _
        %p1094 = scmp.lt.s32.totalorder %s24, 1
        %s1095 = scalar_select %p1094, %s24, 1
        %s1096 = scalar_lea.vmem %s3, %s1095
        // Predicated region
        $region53: #{tpu_custom_call.1} parent=31 // pred_check
          %p1097 = pneg %p134
        $region54: #{tpu_custom_call.1} parent=31 // pred_check_branch
          %1099 = sbr.rel (%p1097) target = $region56
        $region55: #{tpu_custom_call.1} parent=31 // pred_region
          _
        $region56: #{tpu_custom_call.1} parent=31 // pred_fallthru
          _
      $region32: #{tpu_custom_call.1} parent=5 // pred_fallthru
        _
      %p1100 = scmp.le.s32.totalorder 2, %s15
      // Predicated region
      $region57: #{tpu_custom_call.1} parent=5 // pred_check
        %p1101 = pneg %p1100
      $region58: #{tpu_custom_call.1} parent=5 // pred_check_branch
        %1103 = sbr.rel (%p1101) target = $region60
      $region59: #{tpu_custom_call.1} parent=5 // pred_region
        %s1104 = ssub.s32 %s15, 2
        // Predicated region
        $region61: #{tpu_custom_call.1} parent=59 // pred_check
          %p1105 = pneg %p140
        $region62: #{tpu_custom_call.1} parent=59 // pred_check_branch
          %1107 = sbr.rel (%p1105) target = $region64
        $region63: #{tpu_custom_call.1} parent=59 // pred_region
          %p1108 = scmp.lt.s32.totalorder %s26, 1
          %s1109 = scalar_select %p1108, %s26, 1
          %s1110 = scalar_lea.vmem %s3, %s1109
        $region64: #{tpu_custom_call.1} parent=59 // pred_fallthru
          _
      $region60: #{tpu_custom_call.1} parent=5 // pred_fallthru
        _
    $region6: #{tpu_custom_call.1} parent=1 // loop_footer
      %s19 = sadd.s32 1, %s15
    $region7: #{tpu_custom_call.1} parent=1 // loop_footer_branch
      %14 = sbr.rel target = $region3
    $region8: #{tpu_custom_call.1} parent=1 // loop_exit
      _
    %1111 = vsyncpa [#allocation10], 1
    %s1112 = scalar_lea.sflag [#allocation10], 1
    %1113 = vsyncpa %s1112, 1
    %1114 = vsyncpa [#allocation12], 1
    %s1115 = scalar_lea.sflag [#allocation12], 1
    %1116 = vsyncpa %s1115, 1

</llo_original>
